<compile_context>
chip_gen: v6e
topology: v6e:2x2x1
jax: 0.10.0
libtpu: 0.0.40
codegen_flags: <defaults>
</compile_context>

<pallas_src>
import jax
import jax.numpy as jnp
from jax.experimental import pallas as pl
from jax.experimental.pallas import tpu as pltpu

EMB = 300        # conv kernel width == embedding dim (fixed by the module)
NF = 10          # conv output channels / hidden feature dim
NFP = 128        # NF zero-padded to a full lane register (lane-dense I/O)
GAMMA = 1.0


def _round_up(x, m):
    return ((x + m - 1) // m) * m


def _tpu_caps():
    """Per-generation (max rows per tile, vmem_limit_bytes, is_multi_core)."""
    try:
        kind = jax.devices()[0].device_kind.lower()
    except Exception:
        kind = ""
    if "v7" in kind:                                   # 64 MiB VMEM / TC, 2 TCs
        return 2048, 56 * 1024 * 1024, True
    if any(g in kind for g in ("v6", "v5", "v4")):     # 128 MiB VMEM, 1-TC loop
        return 4096, 100 * 1024 * 1024, False
    return 2048, 48 * 1024 * 1024, False               # unknown: be conservative


def _choose_batch_tile(B, Lp, max_rows, multi_core):
    """Largest batch tile whose Bt*Lp rows fit the per-step row budget.  Only
    on multi-TC chips prefer >= 2 grid steps, and only when each step still
    keeps >= 512 matmul rows (otherwise splitting is pure per-step overhead)."""
    bt = max(1, min(B, max_rows // max(Lp, 1)))
    if multi_core and B >= 2 and bt >= B:
        half = (B + 1) // 2
        if half * Lp >= 512:
            bt = half
    return bt


# ----------------------------------------------------------------------------
# Fused conv(3x300, pad=(1,0)) + ReLU + max_pool1d(L) for all three documents.
# ----------------------------------------------------------------------------
def _pack_conv_weight(w3):
    """(3, EMB, NF) conv weight -> (EMB, 3*NFP) bf16; tap k occupies lanes
    [k*128, k*128+10) so the per-tap split in-kernel is a free aligned slice."""
    wc = jnp.zeros((EMB, 3 * NFP), jnp.float32)
    for k in range(3):
        wc = wc.at[:, k * NFP:k * NFP + NF].set(w3[k])
    return wc.astype(jnp.bfloat16)


def _pack_conv_bias(b):
    """(1, NF) -> (1, NFP) zero-padded (padded lanes stay exactly 0)."""
    return jnp.zeros((1, NFP), jnp.float32).at[:, :NF].set(b)


def _conv_relu_pool_tile(x, w, b, l_valid):
    """x: (Bt, Lp, EMB), w: (EMB, 3*NFP) bf16, b: (1, NFP) -> (Bt, NFP) f32.

    Conv2d(1, NF, (3, EMB), padding=(1, 0)) + ReLU + global max-pool for one
    batch tile.  Lp % 8 == 0; rows >= l_valid are zero length-padding."""
    Bt, Lp, _ = x.shape
    xb = x if x.dtype == jnp.bfloat16 else x.astype(jnp.bfloat16)
    # One MXU pass covers all three kernel-height taps (K=300, N=384).
    # Lp % 8 == 0 keeps both reshapes pure layout views (no relayout copies).
    p = jnp.dot(xb.reshape(Bt * Lp, EMB), w,
                preferred_element_type=jnp.float32).reshape(Bt, Lp, 3 * NFP)
    p0 = p[:, :, 0 * NFP:1 * NFP]   # x[l] @ W_top    -> contributes to y[l+1]
    p1 = p[:, :, 1 * NFP:2 * NFP]   # x[l] @ W_mid    -> y[l]
    p2 = p[:, :, 2 * NFP:3 * NFP]   # x[l] @ W_bottom -> y[l-1]
    # +/-1 row shift of the outer taps via zero-row concatenation: the zero
    # row is exactly torch's padding=(1,0) row, so no rolls / boundary masks.
    zrow = jnp.zeros((Bt, 1, NFP), jnp.float32)
    c0 = jnp.concatenate([zrow, p0[:, :Lp - 1, :]], axis=1)  # row l: x[l-1]@W_top
    c2 = jnp.concatenate([p2[:, 1:, :], zrow], axis=1)       # row l: x[l+1]@W_bot
    h = jnp.maximum(c0 + p1 + c2 + b, 0.0)                   # (Bt, Lp, NFP)
    if l_valid < Lp:
        # Zero the length-padding rows (they carry the bias) before the pool;
        # safe because ReLU outputs are >= 0.
        lidx = jax.lax.broadcasted_iota(jnp.int32, (1, Lp, NFP), 1)
        h = jnp.where(lidx < l_valid, h, 0.0)
    return jnp.max(h, axis=1)                                 # (Bt, NFP)


def conv_relu_maxpool_fused(doc, a1, a2, w0, b0, w1, b1):
    """conv0 on doc and conv01 on a1/a2, one pallas_call.
    doc/a1/a2: (B, L, EMB) -> three (B, NFP) pooled feature maps (f32)."""
    B, L, _ = doc.shape
    Lp = _round_up(L, 8)
    max_rows, vmem_limit, multi_core = _tpu_caps()
    Bt = _choose_batch_tile(B, Lp, max_rows, multi_core)
    nb = pl.cdiv(B, Bt)
    Bp = nb * Bt

    def prep(x):
        # TODO(synk): produce embeddings upstream in bf16 with L % 8 == 0 and
        # B % Bt == 0 so this pad (an extra HBM pass) never materializes.
        if Lp != L or Bp != B:
            x = jnp.pad(x, ((0, Bp - B), (0, Lp - L), (0, 0)))
        return x

    doc, a1, a2 = prep(doc), prep(a1), prep(a2)
    w0c, w1c = _pack_conv_weight(w0), _pack_conv_weight(w1)
    b0c, b1c = _pack_conv_bias(b0), _pack_conv_bias(b1)

    def kernel(doc_ref, a1_ref, a2_ref, w0_ref, w1_ref, b0_ref, b1_ref,
               o0_ref, o1_ref, o2_ref):
        # doc/a1/a2: (Bt, Lp, EMB) tiles; w*: resident packed weights;
        # o*: (Bt, NFP) lane-dense pooled features.
        o0_ref[...] = _conv_relu_pool_tile(doc_ref[...], w0_ref[...],
                                           b0_ref[...], L)
        o1_ref[...] = _conv_relu_pool_tile(a1_ref[...], w1_ref[...],
                                           b1_ref[...], L)
        o2_ref[...] = _conv_relu_pool_tile(a2_ref[...], w1_ref[...],
                                           b1_ref[...], L)

    x_spec = pl.BlockSpec((Bt, Lp, EMB), lambda j: (j, 0, 0))
    w_spec = pl.BlockSpec((EMB, 3 * NFP), lambda j: (0, 0))   # VMEM-resident
    b_spec = pl.BlockSpec((1, NFP), lambda j: (0, 0))         # VMEM-resident
    o_spec = pl.BlockSpec((None, Bt, NFP), lambda j: (j, 0, 0))
    o_shape = jax.ShapeDtypeStruct((nb, Bt, NFP), jnp.float32)

    o0, o1, o2 = pl.pallas_call(
        kernel,
        out_shape=(o_shape, o_shape, o_shape),
        grid=(nb,),
        in_specs=[x_spec, x_spec, x_spec, w_spec, w_spec, b_spec, b_spec],
        out_specs=(o_spec, o_spec, o_spec),
        compiler_params=pltpu.CompilerParams(
            dimension_semantics=("parallel",),
            vmem_limit_bytes=vmem_limit),
    )(doc, a1, a2, w0c, w1c, b0c, b1c)
    return (o0.reshape(Bp, NFP)[:B],
            o1.reshape(Bp, NFP)[:B],
            o2.reshape(Bp, NFP)[:B])


# ----------------------------------------------------------------------------
# Linear heads + ranking difference + MSE + BCEWithLogits loss (plain jnp:
# a few hundred FLOPs on (B, 10) tensors -- cheaper than a kernel launch).
# ----------------------------------------------------------------------------
def _heads_and_loss(params, x_feat, d1_feat, d2_feat, y, label):
    x = x_feat[:, :NF]
    d1 = d1_feat[:, :NF]
    d2 = d2_feat[:, :NF]

    h = jax.nn.relu(x @ params['doc1_w'] + params['doc1_b'])
    rating = h @ params['final_w'] + params['final_b']               # (B, 1)

    def aux_rating(d):
        # doc11 == Linear(20,10) on cat([x, d], 1); when loading real torch
        # weights split W^T columns as [:, :10] -> doc11_wx, [:, 10:] -> doc11_wd.
        hh = jax.nn.relu(x @ params['doc11_wx'] + d @ params['doc11_wd']
                         + params['doc11_b'])
        return hh @ params['final1_w'] + params['final1_b']          # (B, 1)

    z = (aux_rating(d1) - aux_rating(d2))[:, 0]                      # logits (B,)
    t = label.reshape(z.shape)

    mse = jnp.mean((rating - y) ** 2)                                # nn.MSELoss
    # BCEWithLogitsLoss (mean reduction), numerically stable form.
    bce = jnp.mean(jnp.maximum(z, 0.0) - z * t + jnp.log1p(jnp.exp(-jnp.abs(z))))
    return mse + GAMMA * bce


# ----------------------------------------------------------------------------
# Parameters (deterministic synthetic init, shapes from CNN.__init__).
# ----------------------------------------------------------------------------
def init_params(key):
    ks = jax.random.split(key, 13)
    w = lambda k, s: jax.random.normal(k, s, jnp.float32) * 0.05
    return {
        'conv0_w':  w(ks[0], (3, EMB, NF)),   # Conv2d(1,10,(3,300)) weight
        'conv0_b':  w(ks[1], (1, NF)),
        'conv01_w': w(ks[2], (3, EMB, NF)),
        'conv01_b': w(ks[3], (1, NF)),
        'doc1_w':   w(ks[4], (NF, NF)),       # Linear(10,10)
        'doc1_b':   w(ks[5], (1, NF)),
        'final_w':  w(ks[6], (NF, 1)),        # Linear(10,1)
        'final_b':  w(ks[7], (1, 1)),
        'doc11_wx': w(ks[8], (NF, NF)),       # Linear(20,10) split: x columns
        'doc11_wd': w(ks[9], (NF, NF)),       #                    : doc columns
        'doc11_b':  w(ks[10], (1, NF)),
        'final1_w': w(ks[11], (NF, 1)),       # Linear(10,1)
        'final1_b': w(ks[12], (1, 1)),
    }


@jax.jit
def cnn_forward_train(params, doc_org, y, aux1, aux2, label):
    """Equivalent of CNN.forward(data_, mode='train') -> scalar loss."""
    x_feat, d1_feat, d2_feat = conv_relu_maxpool_fused(
        doc_org, aux1, aux2,
        params['conv0_w'], params['conv0_b'],
        params['conv01_w'], params['conv01_b'])
    return _heads_and_loss(params, x_feat, d1_feat, d2_feat, y, label)


if __name__ == "__main__":
    key = jax.random.PRNGKey(0)
    kp, kd, ka1, ka2, ky, kl = jax.random.split(key, 6)
    B, L = 2, 8   # small batch / short docs; EMB must be 300 per the module

    params = init_params(kp)
    # Embeddings produced in bf16 upstream: the conv kernel is HBM-bound on
    # these streams, so bf16 halves the dominant DMA bytes (f32 also accepted).
    doc_org = jax.random.normal(kd, (B, L, EMB), jnp.bfloat16)        # data_[0]
    y = jax.random.normal(ky, (B, 1), jnp.float32)                    # data_[1]
    aux1 = jax.random.normal(ka1, (B, L, EMB), jnp.bfloat16)          # data_[2]
    aux2 = jax.random.normal(ka2, (B, L, EMB), jnp.bfloat16)          # data_[3]
    label = (jax.random.uniform(kl, (B,)) > 0.5).astype(jnp.float32)  # data_[4]

    loss = cnn_forward_train(params, doc_org, y, aux1, aux2, label)
    jax.block_until_ready(loss)
    print("KERNEL_OK")
</pallas_src>

<mosaic_0001>
module attributes {stable_mosaic.version = 11 : i64} {
  func.func @kernel(%arg0: i32, %arg1: memref<2x8x300xbf16, #tpu.memory_space<vmem>>, %arg2: memref<2x8x300xbf16, #tpu.memory_space<vmem>>, %arg3: memref<2x8x300xbf16, #tpu.memory_space<vmem>>, %arg4: memref<300x384xbf16, #tpu.memory_space<vmem>>, %arg5: memref<300x384xbf16, #tpu.memory_space<vmem>>, %arg6: memref<1x128xf32, #tpu.memory_space<vmem>>, %arg7: memref<1x128xf32, #tpu.memory_space<vmem>>, %arg8: memref<1x2x128xf32, #tpu.memory_space<vmem>>, %arg9: memref<1x2x128xf32, #tpu.memory_space<vmem>>, %arg10: memref<1x2x128xf32, #tpu.memory_space<vmem>>) attributes {dimension_semantics = [#tpu.dimension_semantics<parallel>], iteration_bounds = array<i64: 1>, scalar_prefetch = 0 : i64, scratch_operands = 0 : i64, tpu.core_type = #tpu.core_type<tc>, window_params = [{transform_indices = @transform_0, window_bounds = array<i64: 2, 8, 300>}, {transform_indices = @transform_1, window_bounds = array<i64: 2, 8, 300>}, {transform_indices = @transform_2, window_bounds = array<i64: 2, 8, 300>}, {pipeline_mode = #tpu.pipeline_mode<synchronous>, transform_indices = @transform_3, window_bounds = array<i64: 300, 384>}, {pipeline_mode = #tpu.pipeline_mode<synchronous>, transform_indices = @transform_4, window_bounds = array<i64: 300, 384>}, {pipeline_mode = #tpu.pipeline_mode<synchronous>, transform_indices = @transform_5, window_bounds = array<i64: 1, 128>}, {pipeline_mode = #tpu.pipeline_mode<synchronous>, transform_indices = @transform_6, window_bounds = array<i64: 1, 128>}, {transform_indices = @transform_7, window_bounds = array<i64: 1, 2, 128>}, {transform_indices = @transform_8, window_bounds = array<i64: 1, 2, 128>}, {transform_indices = @transform_9, window_bounds = array<i64: 1, 2, 128>}]} {
    %c0 = arith.constant 0 : index
    %c0_0 = arith.constant 0 : index
    %c0_1 = arith.constant 0 : index
    %0 = vector.load %arg1[%c0, %c0_0, %c0_1] : memref<2x8x300xbf16, #tpu.memory_space<vmem>>, vector<2x8x300xbf16>
    %c0_2 = arith.constant 0 : index
    %c0_3 = arith.constant 0 : index
    %1 = vector.load %arg4[%c0_2, %c0_3] : memref<300x384xbf16, #tpu.memory_space<vmem>>, vector<300x384xbf16>
    %c0_4 = arith.constant 0 : index
    %c0_5 = arith.constant 0 : index
    %2 = vector.load %arg6[%c0_4, %c0_5] : memref<1x128xf32, #tpu.memory_space<vmem>>, vector<1x128xf32>
    %3 = vector.shape_cast %0 : vector<2x8x300xbf16> to vector<16x300xbf16>
    %cst = arith.constant dense<0.000000e+00> : vector<16x384xf32>
    %4 = tpu.matmul %3, %1, %cst {dimension_numbers = #tpu.dot_dimension_numbers<[1], [0], [0], [1], [0, 0, 1, 1], [], []>} : vector<16x300xbf16>, vector<300x384xbf16>, vector<16x384xf32> -> vector<16x384xf32>
    %5 = vector.shape_cast %4 : vector<16x384xf32> to vector<2x8x384xf32>
    %6 = vector.extract_strided_slice %5 {offsets = [0, 0, 0], sizes = [2, 8, 128], strides = [1, 1, 1]} : vector<2x8x384xf32> to vector<2x8x128xf32>
    %7 = vector.extract_strided_slice %5 {offsets = [0, 0, 128], sizes = [2, 8, 128], strides = [1, 1, 1]} : vector<2x8x384xf32> to vector<2x8x128xf32>
    %8 = vector.extract_strided_slice %5 {offsets = [0, 0, 256], sizes = [2, 8, 128], strides = [1, 1, 1]} : vector<2x8x384xf32> to vector<2x8x128xf32>
    %cst_6 = arith.constant 0.000000e+00 : f32
    %9 = vector.broadcast %cst_6 : f32 to vector<2x1x128xf32>
    %10 = vector.extract_strided_slice %6 {offsets = [0, 0, 0], sizes = [2, 7, 128], strides = [1, 1, 1]} : vector<2x8x128xf32> to vector<2x7x128xf32>
    %11 = tpu.concatenate %9, %10 in 1 : vector<2x1x128xf32>, vector<2x7x128xf32> -> vector<2x8x128xf32>
    %12 = vector.extract_strided_slice %8 {offsets = [0, 1, 0], sizes = [2, 7, 128], strides = [1, 1, 1]} : vector<2x8x128xf32> to vector<2x7x128xf32>
    %13 = tpu.concatenate %12, %9 in 1 : vector<2x7x128xf32>, vector<2x1x128xf32> -> vector<2x8x128xf32>
    %14 = arith.addf %11, %7 : vector<2x8x128xf32>
    %15 = arith.addf %14, %13 : vector<2x8x128xf32>
    %16 = vector.shape_cast %2 : vector<1x128xf32> to vector<1x1x128xf32>
    %17 = vector.broadcast %16 : vector<1x1x128xf32> to vector<2x8x128xf32>
    %18 = arith.addf %15, %17 : vector<2x8x128xf32>
    %cst_7 = arith.constant 0.000000e+00 : f32
    %19 = vector.broadcast %cst_7 : f32 to vector<2x8x128xf32>
    %20 = arith.maximumf %18, %19 : vector<2x8x128xf32>
    %cst_8 = arith.constant dense<0xFF800000> : vector<2x128xf32>
    %21 = vector.multi_reduction <maximumf>, %20, %cst_8 [1] : vector<2x8x128xf32> to vector<2x128xf32>
    %c0_9 = arith.constant 0 : index
    %c0_10 = arith.constant 0 : index
    %c0_11 = arith.constant 0 : index
    %22 = vector.load %arg8[%c0_9, %c0_10, %c0_11] : memref<1x2x128xf32, #tpu.memory_space<vmem>>, vector<1x2x128xf32>
    %23 = vector.shape_cast %22 : vector<1x2x128xf32> to vector<2x128xf32>
    %24 = vector.shape_cast %21 : vector<2x128xf32> to vector<1x2x128xf32>
    tpu.vector_store %arg8[%c0_9, %c0_10, %c0_11], %24 {strides = array<i32>} : memref<1x2x128xf32, #tpu.memory_space<vmem>>, vector<1x2x128xf32>,
    %c0_12 = arith.constant 0 : index
    %c0_13 = arith.constant 0 : index
    %c0_14 = arith.constant 0 : index
    %25 = vector.load %arg2[%c0_12, %c0_13, %c0_14] : memref<2x8x300xbf16, #tpu.memory_space<vmem>>, vector<2x8x300xbf16>
    %c0_15 = arith.constant 0 : index
    %c0_16 = arith.constant 0 : index
    %26 = vector.load %arg5[%c0_15, %c0_16] : memref<300x384xbf16, #tpu.memory_space<vmem>>, vector<300x384xbf16>
    %c0_17 = arith.constant 0 : index
    %c0_18 = arith.constant 0 : index
    %27 = vector.load %arg7[%c0_17, %c0_18] : memref<1x128xf32, #tpu.memory_space<vmem>>, vector<1x128xf32>
    %28 = vector.shape_cast %25 : vector<2x8x300xbf16> to vector<16x300xbf16>
    %cst_19 = arith.constant dense<0.000000e+00> : vector<16x384xf32>
    %29 = tpu.matmul %28, %26, %cst_19 {dimension_numbers = #tpu.dot_dimension_numbers<[1], [0], [0], [1], [0, 0, 1, 1], [], []>} : vector<16x300xbf16>, vector<300x384xbf16>, vector<16x384xf32> -> vector<16x384xf32>
    %30 = vector.shape_cast %29 : vector<16x384xf32> to vector<2x8x384xf32>
    %31 = vector.extract_strided_slice %30 {offsets = [0, 0, 0], sizes = [2, 8, 128], strides = [1, 1, 1]} : vector<2x8x384xf32> to vector<2x8x128xf32>
    %32 = vector.extract_strided_slice %30 {offsets = [0, 0, 128], sizes = [2, 8, 128], strides = [1, 1, 1]} : vector<2x8x384xf32> to vector<2x8x128xf32>
    %33 = vector.extract_strided_slice %30 {offsets = [0, 0, 256], sizes = [2, 8, 128], strides = [1, 1, 1]} : vector<2x8x384xf32> to vector<2x8x128xf32>
    %cst_20 = arith.constant 0.000000e+00 : f32
    %34 = vector.broadcast %cst_20 : f32 to vector<2x1x128xf32>
    %35 = vector.extract_strided_slice %31 {offsets = [0, 0, 0], sizes = [2, 7, 128], strides = [1, 1, 1]} : vector<2x8x128xf32> to vector<2x7x128xf32>
    %36 = tpu.concatenate %34, %35 in 1 : vector<2x1x128xf32>, vector<2x7x128xf32> -> vector<2x8x128xf32>
    %37 = vector.extract_strided_slice %33 {offsets = [0, 1, 0], sizes = [2, 7, 128], strides = [1, 1, 1]} : vector<2x8x128xf32> to vector<2x7x128xf32>
    %38 = tpu.concatenate %37, %34 in 1 : vector<2x7x128xf32>, vector<2x1x128xf32> -> vector<2x8x128xf32>
    %39 = arith.addf %36, %32 : vector<2x8x128xf32>
    %40 = arith.addf %39, %38 : vector<2x8x128xf32>
    %41 = vector.shape_cast %27 : vector<1x128xf32> to vector<1x1x128xf32>
    %42 = vector.broadcast %41 : vector<1x1x128xf32> to vector<2x8x128xf32>
    %43 = arith.addf %40, %42 : vector<2x8x128xf32>
    %cst_21 = arith.constant 0.000000e+00 : f32
    %44 = vector.broadcast %cst_21 : f32 to vector<2x8x128xf32>
    %45 = arith.maximumf %43, %44 : vector<2x8x128xf32>
    %cst_22 = arith.constant dense<0xFF800000> : vector<2x128xf32>
    %46 = vector.multi_reduction <maximumf>, %45, %cst_22 [1] : vector<2x8x128xf32> to vector<2x128xf32>
    %c0_23 = arith.constant 0 : index
    %c0_24 = arith.constant 0 : index
    %c0_25 = arith.constant 0 : index
    %47 = vector.load %arg9[%c0_23, %c0_24, %c0_25] : memref<1x2x128xf32, #tpu.memory_space<vmem>>, vector<1x2x128xf32>
    %48 = vector.shape_cast %47 : vector<1x2x128xf32> to vector<2x128xf32>
    %49 = vector.shape_cast %46 : vector<2x128xf32> to vector<1x2x128xf32>
    tpu.vector_store %arg9[%c0_23, %c0_24, %c0_25], %49 {strides = array<i32>} : memref<1x2x128xf32, #tpu.memory_space<vmem>>, vector<1x2x128xf32>,
    %c0_26 = arith.constant 0 : index
    %c0_27 = arith.constant 0 : index
    %c0_28 = arith.constant 0 : index
    %50 = vector.load %arg3[%c0_26, %c0_27, %c0_28] : memref<2x8x300xbf16, #tpu.memory_space<vmem>>, vector<2x8x300xbf16>
    %c0_29 = arith.constant 0 : index
    %c0_30 = arith.constant 0 : index
    %51 = vector.load %arg5[%c0_29, %c0_30] : memref<300x384xbf16, #tpu.memory_space<vmem>>, vector<300x384xbf16>
    %c0_31 = arith.constant 0 : index
    %c0_32 = arith.constant 0 : index
    %52 = vector.load %arg7[%c0_31, %c0_32] : memref<1x128xf32, #tpu.memory_space<vmem>>, vector<1x128xf32>
    %53 = vector.shape_cast %50 : vector<2x8x300xbf16> to vector<16x300xbf16>
    %cst_33 = arith.constant dense<0.000000e+00> : vector<16x384xf32>
    %54 = tpu.matmul %53, %51, %cst_33 {dimension_numbers = #tpu.dot_dimension_numbers<[1], [0], [0], [1], [0, 0, 1, 1], [], []>} : vector<16x300xbf16>, vector<300x384xbf16>, vector<16x384xf32> -> vector<16x384xf32>
    %55 = vector.shape_cast %54 : vector<16x384xf32> to vector<2x8x384xf32>
    %56 = vector.extract_strided_slice %55 {offsets = [0, 0, 0], sizes = [2, 8, 128], strides = [1, 1, 1]} : vector<2x8x384xf32> to vector<2x8x128xf32>
    %57 = vector.extract_strided_slice %55 {offsets = [0, 0, 128], sizes = [2, 8, 128], strides = [1, 1, 1]} : vector<2x8x384xf32> to vector<2x8x128xf32>
    %58 = vector.extract_strided_slice %55 {offsets = [0, 0, 256], sizes = [2, 8, 128], strides = [1, 1, 1]} : vector<2x8x384xf32> to vector<2x8x128xf32>
    %cst_34 = arith.constant 0.000000e+00 : f32
    %59 = vector.broadcast %cst_34 : f32 to vector<2x1x128xf32>
    %60 = vector.extract_strided_slice %56 {offsets = [0, 0, 0], sizes = [2, 7, 128], strides = [1, 1, 1]} : vector<2x8x128xf32> to vector<2x7x128xf32>
    %61 = tpu.concatenate %59, %60 in 1 : vector<2x1x128xf32>, vector<2x7x128xf32> -> vector<2x8x128xf32>
    %62 = vector.extract_strided_slice %58 {offsets = [0, 1, 0], sizes = [2, 7, 128], strides = [1, 1, 1]} : vector<2x8x128xf32> to vector<2x7x128xf32>
    %63 = tpu.concatenate %62, %59 in 1 : vector<2x7x128xf32>, vector<2x1x128xf32> -> vector<2x8x128xf32>
    %64 = arith.addf %61, %57 : vector<2x8x128xf32>
    %65 = arith.addf %64, %63 : vector<2x8x128xf32>
    %66 = vector.shape_cast %52 : vector<1x128xf32> to vector<1x1x128xf32>
    %67 = vector.broadcast %66 : vector<1x1x128xf32> to vector<2x8x128xf32>
    %68 = arith.addf %65, %67 : vector<2x8x128xf32>
    %cst_35 = arith.constant 0.000000e+00 : f32
    %69 = vector.broadcast %cst_35 : f32 to vector<2x8x128xf32>
    %70 = arith.maximumf %68, %69 : vector<2x8x128xf32>
    %cst_36 = arith.constant dense<0xFF800000> : vector<2x128xf32>
    %71 = vector.multi_reduction <maximumf>, %70, %cst_36 [1] : vector<2x8x128xf32> to vector<2x128xf32>
    %c0_37 = arith.constant 0 : index
    %c0_38 = arith.constant 0 : index
    %c0_39 = arith.constant 0 : index
    %72 = vector.load %arg10[%c0_37, %c0_38, %c0_39] : memref<1x2x128xf32, #tpu.memory_space<vmem>>, vector<1x2x128xf32>
    %73 = vector.shape_cast %72 : vector<1x2x128xf32> to vector<2x128xf32>
    %74 = vector.shape_cast %71 : vector<2x128xf32> to vector<1x2x128xf32>
    tpu.vector_store %arg10[%c0_37, %c0_38, %c0_39], %74 {strides = array<i32>} : memref<1x2x128xf32, #tpu.memory_space<vmem>>, vector<1x2x128xf32>,
    return
  }
  func.func @transform_0(%arg0: i32) -> (i32, i32, i32) {
    %c0_i32 = arith.constant 0 : i32
    %c0_i32_0 = arith.constant 0 : i32
    %c0_i32_1 = arith.constant 0 : i32
    return %arg0, %c0_i32, %c0_i32_0 : i32, i32, i32
  }
  func.func @transform_1(%arg0: i32) -> (i32, i32, i32) {
    %c0_i32 = arith.constant 0 : i32
    %c0_i32_0 = arith.constant 0 : i32
    %c0_i32_1 = arith.constant 0 : i32
    return %arg0, %c0_i32, %c0_i32_0 : i32, i32, i32
  }
  func.func @transform_2(%arg0: i32) -> (i32, i32, i32) {
    %c0_i32 = arith.constant 0 : i32
    %c0_i32_0 = arith.constant 0 : i32
    %c0_i32_1 = arith.constant 0 : i32
    return %arg0, %c0_i32, %c0_i32_0 : i32, i32, i32
  }
  func.func @transform_3(%arg0: i32) -> (i32, i32) {
    %c0_i32 = arith.constant 0 : i32
    %c0_i32_0 = arith.constant 0 : i32
    %c0_i32_1 = arith.constant 0 : i32
    return %c0_i32, %c0_i32_0 : i32, i32
  }
  func.func @transform_4(%arg0: i32) -> (i32, i32) {
    %c0_i32 = arith.constant 0 : i32
    %c0_i32_0 = arith.constant 0 : i32
    %c0_i32_1 = arith.constant 0 : i32
    return %c0_i32, %c0_i32_0 : i32, i32
  }
  func.func @transform_5(%arg0: i32) -> (i32, i32) {
    %c0_i32 = arith.constant 0 : i32
    %c0_i32_0 = arith.constant 0 : i32
    %c0_i32_1 = arith.constant 0 : i32
    return %c0_i32, %c0_i32_0 : i32, i32
  }
  func.func @transform_6(%arg0: i32) -> (i32, i32) {
    %c0_i32 = arith.constant 0 : i32
    %c0_i32_0 = arith.constant 0 : i32
    %c0_i32_1 = arith.constant 0 : i32
    return %c0_i32, %c0_i32_0 : i32, i32
  }
  func.func @transform_7(%arg0: i32) -> (i32, i32, i32) {
    %c0_i32 = arith.constant 0 : i32
    %c0_i32_0 = arith.constant 0 : i32
    %c0_i32_1 = arith.constant 0 : i32
    return %arg0, %c0_i32, %c0_i32_0 : i32, i32, i32
  }
  func.func @transform_8(%arg0: i32) -> (i32, i32, i32) {
    %c0_i32 = arith.constant 0 : i32
    %c0_i32_0 = arith.constant 0 : i32
    %c0_i32_1 = arith.constant 0 : i32
    return %arg0, %c0_i32, %c0_i32_0 : i32, i32, i32
  }
  func.func @transform_9(%arg0: i32) -> (i32, i32, i32) {
    %c0_i32 = arith.constant 0 : i32
    %c0_i32_0 = arith.constant 0 : i32
    %c0_i32_1 = arith.constant 0 : i32
    return %arg0, %c0_i32, %c0_i32_0 : i32, i32, i32
  }
}

</mosaic_0001>

<llo_original>
// kernel: cnn_forward_train.1
$region0: #{cnn_forward_train.1}
  #allocation0 [shape = 'u32[]', space=smem, size = 0x4, offset = 0x4, fixed_abs, tag = 'smem constant byte address 0x4 - core index']
  #allocation1 [shape = 'u32[144,128]{1,0:T(1,128)}', space=vmem, size = 0x12000, scoped, tag = 'internal scratch']
  %s0 = inlined_call_operand.vmem [shape: bf16[2,8,300], index: 0, kind: input, shape index: {}]
  %s1 = inlined_call_operand.vmem [shape: bf16[2,8,300], index: 1, kind: input, shape index: {}]
  %s2 = inlined_call_operand.vmem [shape: bf16[2,8,300], index: 2, kind: input, shape index: {}]
  %s3 = inlined_call_operand.vmem [shape: bf16[300,384], index: 3, kind: input, shape index: {}]
  %s4 = inlined_call_operand.vmem [shape: bf16[300,384], index: 4, kind: input, shape index: {}]
  %s5 = inlined_call_operand.vmem [shape: f32[1,128], index: 5, kind: input, shape index: {}]
  %s6 = inlined_call_operand.vmem [shape: f32[1,128], index: 6, kind: input, shape index: {}]
  %s7 = inlined_call_operand.vmem [shape: f32[1,2,128], index: 7, kind: output, shape index: {0}]
  %s8 = inlined_call_operand.vmem [shape: f32[1,2,128], index: 8, kind: output, shape index: {1}]
  %s9 = inlined_call_operand.vmem [shape: f32[1,2,128], index: 9, kind: output, shape index: {2}]
  %10 = xla_tuple %s7, %s8, %s9
  %s11 = sld [smem:[#allocation0]]
  $region54: #{cnn_forward_train.1} parent=0
    _
  %s13 = ssub.s32 1, %s11
  %s14 = scalar_select 0, %s13, %s11
  // Predicated region
  $region2: #{cnn_forward_train.1} parent=0 // pred_check
    _
  $region3: #{cnn_forward_train.1} parent=0 // pred_check_branch
    %16 = sbr.rel (0) target = $region5
  $region4: #{cnn_forward_train.1} parent=0 // pred_region
    _
  $region5: #{cnn_forward_train.1} parent=0 // pred_fallthru
    _
  // Predicated region
  $region6: #{cnn_forward_train.1} parent=0 // pred_check
    _
  $region7: #{cnn_forward_train.1} parent=0 // pred_check_branch
    %18 = sbr.rel (0) target = $region9
  $region8: #{cnn_forward_train.1} parent=0 // pred_region
    _
  $region9: #{cnn_forward_train.1} parent=0 // pred_fallthru
    _
  // Predicated region
  $region10: #{cnn_forward_train.1} parent=0 // pred_check
    _
  $region11: #{cnn_forward_train.1} parent=0 // pred_check_branch
    %20 = sbr.rel (0) target = $region13
  $region12: #{cnn_forward_train.1} parent=0 // pred_region
    _
  $region13: #{cnn_forward_train.1} parent=0 // pred_fallthru
    _
  // Predicated region
  $region14: #{cnn_forward_train.1} parent=0 // pred_check
    _
  $region15: #{cnn_forward_train.1} parent=0 // pred_check_branch
    %22 = sbr.rel (0) target = $region17
  $region16: #{cnn_forward_train.1} parent=0 // pred_region
    _
  $region17: #{cnn_forward_train.1} parent=0 // pred_fallthru
    _
  // Predicated region
  $region18: #{cnn_forward_train.1} parent=0 // pred_check
    _
  $region19: #{cnn_forward_train.1} parent=0 // pred_check_branch
    %24 = sbr.rel (0) target = $region21
  $region20: #{cnn_forward_train.1} parent=0 // pred_region
    _
  $region21: #{cnn_forward_train.1} parent=0 // pred_fallthru
    _
  // Predicated region
  $region22: #{cnn_forward_train.1} parent=0 // pred_check
    _
  $region23: #{cnn_forward_train.1} parent=0 // pred_check_branch
    %26 = sbr.rel (0) target = $region25
  $region24: #{cnn_forward_train.1} parent=0 // pred_region
    _
  $region25: #{cnn_forward_train.1} parent=0 // pred_fallthru
    _
  // Predicated region
  $region26: #{cnn_forward_train.1} parent=0 // pred_check
    _
  $region27: #{cnn_forward_train.1} parent=0 // pred_check_branch
    %28 = sbr.rel (0) target = $region29
  $region28: #{cnn_forward_train.1} parent=0 // pred_region
    _
  $region29: #{cnn_forward_train.1} parent=0 // pred_fallthru
    _
  %v30 = vld [vmem:[%s0] sm:$0xff]
  %v31 = vld [vmem:[%s0 + $0x8] sm:$0xf]
  %v32 = vld [vmem:[%s0 + $0xc] sm:$0xff]
  %v33 = vld [vmem:[%s0 + $0x14] sm:$0xf]
  %v34 = vld [vmem:[%s3] sm:$0xff]
  %v35 = vld [vmem:[%s3 + $0x8] sm:$0xf]
  %v36 = vld [vmem:[%s3 + $0xc] sm:$0xff]
  %v37 = vld [vmem:[%s3 + $0x14] sm:$0xf]
  %v38 = vld [vmem:[%s3 + $0x18] sm:$0xff]
  %v39 = vld [vmem:[%s3 + $0x20] sm:$0xf]
  %v40 = vld [vmem:[%s3 + $0x24] sm:$0xff]
  %v41 = vld [vmem:[%s3 + $0x2c] sm:$0xf]
  %v42 = vld [vmem:[%s3 + $0x30] sm:$0xff]
  %v43 = vld [vmem:[%s3 + $0x38] sm:$0xf]
  %v44 = vld [vmem:[%s3 + $0x3c] sm:$0xff]
  %v45 = vld [vmem:[%s3 + $0x44] sm:$0xf]
  %v46 = vld [vmem:[%s3 + $0x48] sm:$0xff]
  %v47 = vld [vmem:[%s3 + $0x50] sm:$0xf]
  %v48 = vld [vmem:[%s3 + $0x54] sm:$0xff]
  %v49 = vld [vmem:[%s3 + $0x5c] sm:$0xf]
  %v50 = vld [vmem:[%s3 + $0x60] sm:$0xff]
  %v51 = vld [vmem:[%s3 + $0x68] sm:$0xf]
  %v52 = vld [vmem:[%s3 + $0x6c] sm:$0xff]
  %v53 = vld [vmem:[%s3 + $0x74] sm:$0xf]
  %v54 = vld [vmem:[%s3 + $0x78] sm:$0xff]
  %v55 = vld [vmem:[%s3 + $0x80] sm:$0xf]
  %v56 = vld [vmem:[%s3 + $0x84] sm:$0xff]
  %v57 = vld [vmem:[%s3 + $0x8c] sm:$0xf]
  %v58 = vld [vmem:[%s3 + $0x90] sm:$0xff]
  %v59 = vld [vmem:[%s3 + $0x98] sm:$0xf]
  %v60 = vld [vmem:[%s3 + $0x9c] sm:$0xff]
  %v61 = vld [vmem:[%s3 + $0xa4] sm:$0xf]
  %v62 = vld [vmem:[%s3 + $0xa8] sm:$0xff]
  %v63 = vld [vmem:[%s3 + $0xb0] sm:$0xf]
  %v64 = vld [vmem:[%s3 + $0xb4] sm:$0xff]
  %v65 = vld [vmem:[%s3 + $0xbc] sm:$0xf]
  %v66 = vld [vmem:[%s3 + $0xc0] sm:$0xff]
  %v67 = vld [vmem:[%s3 + $0xc8] sm:$0xf]
  %v68 = vld [vmem:[%s3 + $0xcc] sm:$0xff]
  %v69 = vld [vmem:[%s3 + $0xd4] sm:$0xf]
  %v70 = vld [vmem:[%s3 + $0xd8] sm:$0xff]
  %v71 = vld [vmem:[%s3 + $0xe0] sm:$0xf]
  %v72 = vld [vmem:[%s3 + $0xe4] sm:$0xff]
  %v73 = vld [vmem:[%s3 + $0xec] sm:$0xf]
  %v74 = vld [vmem:[%s3 + $0xf0] sm:$0xff]
  %v75 = vld [vmem:[%s3 + $0xf8] sm:$0xf]
  %v76 = vld [vmem:[%s3 + $0xfc] sm:$0xff]
  %v77 = vld [vmem:[%s3 + $0x104] sm:$0xf]
  %v78 = vld [vmem:[%s3 + $0x108] sm:$0xff]
  %v79 = vld [vmem:[%s3 + $0x110] sm:$0xf]
  %v80 = vld [vmem:[%s3 + $0x114] sm:$0xff]
  %v81 = vld [vmem:[%s3 + $0x11c] sm:$0xf]
  %v82 = vld [vmem:[%s3 + $0x120] sm:$0xff]
  %v83 = vld [vmem:[%s3 + $0x128] sm:$0xf]
  %v84 = vld [vmem:[%s3 + $0x12c] sm:$0xff]
  %v85 = vld [vmem:[%s3 + $0x134] sm:$0xf]
  %v86 = vld [vmem:[%s3 + $0x138] sm:$0xff]
  %v87 = vld [vmem:[%s3 + $0x140] sm:$0xf]
  %v88 = vld [vmem:[%s3 + $0x144] sm:$0xff]
  %v89 = vld [vmem:[%s3 + $0x14c] sm:$0xf]
  %v90 = vld [vmem:[%s3 + $0x150] sm:$0xff]
  %v91 = vld [vmem:[%s3 + $0x158] sm:$0xf]
  %v92 = vld [vmem:[%s3 + $0x15c] sm:$0xff]
  %v93 = vld [vmem:[%s3 + $0x164] sm:$0xf]
  %v94 = vld [vmem:[%s3 + $0x168] sm:$0xff]
  %v95 = vld [vmem:[%s3 + $0x170] sm:$0xf]
  %v96 = vld [vmem:[%s3 + $0x174] sm:$0xff]
  %v97 = vld [vmem:[%s3 + $0x17c] sm:$0xf]
  %v98 = vld [vmem:[%s3 + $0x180] sm:$0xff]
  %v99 = vld [vmem:[%s3 + $0x188] sm:$0xf]
  %v100 = vld [vmem:[%s3 + $0x18c] sm:$0xff]
  %v101 = vld [vmem:[%s3 + $0x194] sm:$0xf]
  %v102 = vld [vmem:[%s3 + $0x198] sm:$0xff]
  %v103 = vld [vmem:[%s3 + $0x1a0] sm:$0xf]
  %v104 = vld [vmem:[%s3 + $0x1a4] sm:$0xff]
  %v105 = vld [vmem:[%s3 + $0x1ac] sm:$0xf]
  %v106 = vld [vmem:[%s3 + $0x1b0] sm:$0xff]
  %v107 = vld [vmem:[%s3 + $0x1b8] sm:$0xf]
  %v108 = vld [vmem:[%s3 + $0x1bc] sm:$0x33]
  %v109 = vld [vmem:[%s3 + $0x1c4] sm:$0x3]
  %v110 = vld [vmem:[%s5] sm:$0x1]
  %v115 = vunpack.c.l.b16 %v30
  %v116 = vunpack.c.h.b16 %v30
  %v117 = vunpack.c.l.b16 %v31
  %v118 = vunpack.c.l.b16 %v32
  %v119 = vunpack.c.h.b16 %v32
  %v120 = vunpack.c.l.b16 %v33
  %v121 = vpack.c.b16 %v118, %v115
  %v122 = vpack.c.b16 %v119, %v116
  %v123 = vpack.c.b16 %v120, %v117
  %v202 = vunpack.c.l.b16 %v34
  %v203 = vunpack.c.h.b16 %v34
  %v204 = vunpack.c.l.b16 %v35
  %v205 = vunpack.c.l.b16 %v36
  %v206 = vunpack.c.h.b16 %v36
  %v207 = vunpack.c.l.b16 %v37
  %v208 = vunpack.c.l.b16 %v38
  %v209 = vunpack.c.h.b16 %v38
  %v210 = vunpack.c.l.b16 %v39
  %v211 = vunpack.c.l.b16 %v40
  %v212 = vunpack.c.h.b16 %v40
  %v213 = vunpack.c.l.b16 %v41
  %v214 = vunpack.c.l.b16 %v42
  %v215 = vunpack.c.h.b16 %v42
  %v216 = vunpack.c.l.b16 %v43
  %v217 = vunpack.c.l.b16 %v44
  %v218 = vunpack.c.h.b16 %v44
  %v219 = vunpack.c.l.b16 %v45
  %v220 = vunpack.c.l.b16 %v46
  %v221 = vunpack.c.h.b16 %v46
  %v222 = vunpack.c.l.b16 %v47
  %v223 = vunpack.c.l.b16 %v48
  %v224 = vunpack.c.h.b16 %v48
  %v225 = vunpack.c.l.b16 %v49
  %v226 = vunpack.c.l.b16 %v50
  %v227 = vunpack.c.h.b16 %v50
  %v228 = vunpack.c.l.b16 %v51
  %v229 = vunpack.c.l.b16 %v52
  %v230 = vunpack.c.h.b16 %v52
  %v231 = vunpack.c.l.b16 %v53
  %v232 = vunpack.c.l.b16 %v54
  %v233 = vunpack.c.h.b16 %v54
  %v234 = vunpack.c.l.b16 %v55
  %v235 = vunpack.c.l.b16 %v56
  %v236 = vunpack.c.h.b16 %v56
  %v237 = vunpack.c.l.b16 %v57
  %v238 = vunpack.c.l.b16 %v58
  %v239 = vunpack.c.h.b16 %v58
  %v240 = vunpack.c.l.b16 %v59
  %v241 = vunpack.c.l.b16 %v60
  %v242 = vunpack.c.h.b16 %v60
  %v243 = vunpack.c.l.b16 %v61
  %v244 = vunpack.c.l.b16 %v62
  %v245 = vunpack.c.h.b16 %v62
  %v246 = vunpack.c.l.b16 %v63
  %v247 = vunpack.c.l.b16 %v64
  %v248 = vunpack.c.h.b16 %v64
  %v249 = vunpack.c.l.b16 %v65
  %v250 = vunpack.c.l.b16 %v66
  %v251 = vunpack.c.h.b16 %v66
  %v252 = vunpack.c.l.b16 %v67
  %v253 = vunpack.c.l.b16 %v68
  %v254 = vunpack.c.h.b16 %v68
  %v255 = vunpack.c.l.b16 %v69
  %v256 = vunpack.c.l.b16 %v70
  %v257 = vunpack.c.h.b16 %v70
  %v258 = vunpack.c.l.b16 %v71
  %v259 = vunpack.c.l.b16 %v72
  %v260 = vunpack.c.h.b16 %v72
  %v261 = vunpack.c.l.b16 %v73
  %v262 = vunpack.c.l.b16 %v74
  %v263 = vunpack.c.h.b16 %v74
  %v264 = vunpack.c.l.b16 %v75
  %v265 = vunpack.c.l.b16 %v76
  %v266 = vunpack.c.h.b16 %v76
  %v267 = vunpack.c.l.b16 %v77
  %v268 = vunpack.c.l.b16 %v78
  %v269 = vunpack.c.h.b16 %v78
  %v270 = vunpack.c.l.b16 %v79
  %v271 = vunpack.c.l.b16 %v80
  %v272 = vunpack.c.h.b16 %v80
  %v273 = vunpack.c.l.b16 %v81
  %v274 = vunpack.c.l.b16 %v82
  %v275 = vunpack.c.h.b16 %v82
  %v276 = vunpack.c.l.b16 %v83
  %v277 = vunpack.c.l.b16 %v84
  %v278 = vunpack.c.h.b16 %v84
  %v279 = vunpack.c.l.b16 %v85
  %v280 = vunpack.c.l.b16 %v86
  %v281 = vunpack.c.h.b16 %v86
  %v282 = vunpack.c.l.b16 %v87
  %v283 = vunpack.c.l.b16 %v88
  %v284 = vunpack.c.h.b16 %v88
  %v285 = vunpack.c.l.b16 %v89
  %v286 = vunpack.c.l.b16 %v90
  %v287 = vunpack.c.h.b16 %v90
  %v288 = vunpack.c.l.b16 %v91
  %v289 = vunpack.c.l.b16 %v92
  %v290 = vunpack.c.h.b16 %v92
  %v291 = vunpack.c.l.b16 %v93
  %v292 = vunpack.c.l.b16 %v94
  %v293 = vunpack.c.h.b16 %v94
  %v294 = vunpack.c.l.b16 %v95
  %v295 = vunpack.c.l.b16 %v96
  %v296 = vunpack.c.h.b16 %v96
  %v297 = vunpack.c.l.b16 %v97
  %v298 = vunpack.c.l.b16 %v98
  %v299 = vunpack.c.h.b16 %v98
  %v300 = vunpack.c.l.b16 %v99
  %v301 = vunpack.c.l.b16 %v100
  %v302 = vunpack.c.h.b16 %v100
  %v303 = vunpack.c.l.b16 %v101
  %v304 = vunpack.c.l.b16 %v102
  %v305 = vunpack.c.h.b16 %v102
  %v306 = vunpack.c.l.b16 %v103
  %v307 = vunpack.c.l.b16 %v104
  %v308 = vunpack.c.h.b16 %v104
  %v309 = vunpack.c.l.b16 %v105
  %v310 = vunpack.c.l.b16 %v106
  %v311 = vunpack.c.h.b16 %v106
  %v312 = vunpack.c.l.b16 %v107
  %v313 = vunpack.c.l.b16 %v108
  %v314 = vunpack.c.h.b16 %v108
  %v315 = vunpack.c.l.b16 %v109
  %v316 = vpack.c.b16 %v205, %v202
  %v317 = vpack.c.b16 %v206, %v203
  %v318 = vpack.c.b16 %v207, %v204
  %v319 = vpack.c.b16 %v211, %v208
  %v320 = vpack.c.b16 %v212, %v209
  %v321 = vpack.c.b16 %v213, %v210
  %v322 = vpack.c.b16 %v217, %v214
  %v323 = vpack.c.b16 %v218, %v215
  %v324 = vpack.c.b16 %v219, %v216
  %v325 = vpack.c.b16 %v223, %v220
  %v326 = vpack.c.b16 %v224, %v221
  %v327 = vpack.c.b16 %v225, %v222
  %v328 = vpack.c.b16 %v229, %v226
  %v329 = vpack.c.b16 %v230, %v227
  %v330 = vpack.c.b16 %v231, %v228
  %v331 = vpack.c.b16 %v235, %v232
  %v332 = vpack.c.b16 %v236, %v233
  %v333 = vpack.c.b16 %v237, %v234
  %v334 = vpack.c.b16 %v241, %v238
  %v335 = vpack.c.b16 %v242, %v239
  %v336 = vpack.c.b16 %v243, %v240
  %v337 = vpack.c.b16 %v247, %v244
  %v338 = vpack.c.b16 %v248, %v245
  %v339 = vpack.c.b16 %v249, %v246
  %v340 = vpack.c.b16 %v253, %v250
  %v341 = vpack.c.b16 %v254, %v251
  %v342 = vpack.c.b16 %v255, %v252
  %v343 = vpack.c.b16 %v259, %v256
  %v344 = vpack.c.b16 %v260, %v257
  %v345 = vpack.c.b16 %v261, %v258
  %v346 = vpack.c.b16 %v265, %v262
  %v347 = vpack.c.b16 %v266, %v263
  %v348 = vpack.c.b16 %v267, %v264
  %v349 = vpack.c.b16 %v271, %v268
  %v350 = vpack.c.b16 %v272, %v269
  %v351 = vpack.c.b16 %v273, %v270
  %v352 = vpack.c.b16 %v277, %v274
  %v353 = vpack.c.b16 %v278, %v275
  %v354 = vpack.c.b16 %v279, %v276
  %v355 = vpack.c.b16 %v283, %v280
  %v356 = vpack.c.b16 %v284, %v281
  %v357 = vpack.c.b16 %v285, %v282
  %v358 = vpack.c.b16 %v289, %v286
  %v359 = vpack.c.b16 %v290, %v287
  %v360 = vpack.c.b16 %v291, %v288
  %v361 = vpack.c.b16 %v295, %v292
  %v362 = vpack.c.b16 %v296, %v293
  %v363 = vpack.c.b16 %v297, %v294
  %v364 = vpack.c.b16 %v301, %v298
  %v365 = vpack.c.b16 %v302, %v299
  %v366 = vpack.c.b16 %v303, %v300
  %v367 = vpack.c.b16 %v307, %v304
  %v368 = vpack.c.b16 %v308, %v305
  %v369 = vpack.c.b16 %v309, %v306
  %v370 = vpack.c.b16 %v313, %v310
  %v371 = vpack.c.b16 %v314, %v311
  %v372 = vpack.c.b16 %v315, %v312
  %vm427 = vcmask 359424
  %v429 = vsel %vm427, %v123, 0
  %vm431 = vcmask 1045504
  %v433 = vsel %vm431, %v370, 0
  %v436 = vsel %vm431, %v371, 0
  %v439 = vsel %vm431, %v372, 0
  %441 = vmatprep.subr.bf16.mxu0 %v338
  %442 = vmatpush1.bf16.msra.mxu0 %v337
  %443 = vmatprep.subr.bf16.mxu0 %v335
  %444 = vmatpush1.bf16.msra.mxu0 %v334
  %445 = vmatprep.subr.bf16.mxu0 %v332
  %446 = vmatpush1.bf16.msra.mxu0 %v331
  %447 = vmatprep.subr.bf16.mxu0 %v329
  %448 = vmatpush1.bf16.msra.mxu0 %v328
  %449 = vmatprep.subr.bf16.mxu0 %v326
  %450 = vmatpush1.bf16.msra.mxu0 %v325
  %451 = vmatprep.subr.bf16.mxu0 %v323
  %452 = vmatpush1.bf16.msra.mxu0 %v322
  %453 = vmatprep.subr.bf16.mxu0 %v320
  %454 = vmatpush1.bf16.msra.mxu0 %v319
  %455 = vmatprep.subr.bf16.mxu0 %v317
  %456 = vmatpush1.bf16.msra.mxu0 %v316
  %457 = vmatprep.subr.bf16.mxu0 %v362
  %458 = vmatpush2.bf16.msra.mxu0 %v361
  %459 = vmatprep.subr.bf16.mxu0 %v359
  %460 = vmatpush2.bf16.msra.mxu0 %v358
  %461 = vmatprep.subr.bf16.mxu0 %v356
  %462 = vmatpush2.bf16.msra.mxu0 %v355
  %463 = vmatprep.subr.bf16.mxu0 %v353
  %464 = vmatpush2.bf16.msra.mxu0 %v352
  %465 = vmatprep.subr.bf16.mxu0 %v350
  %466 = vmatpush2.bf16.msra.mxu0 %v349
  %467 = vmatprep.subr.bf16.mxu0 %v347
  %468 = vmatpush2.bf16.msra.mxu0 %v346
  %469 = vmatprep.subr.bf16.mxu0 %v344
  %470 = vmatpush2.bf16.msra.mxu0 %v343
  %471 = vmatprep.subr.bf16.mxu0 %v341
  %472 = vmatpush2.bf16.msra.mxu0 %v340
  %473 = vmatprep.mubr.bf16.mxu0 %v122
  %474 = vmatmul.mubr.bf16.gmra.mxu0 %v121
  %v475 = vpop.f32.mrf.mxu0
  %v476 = vadd.f32 0.0, %v475
  %v477 = vpop.f32.mrf.mxu0
  %v478 = vadd.f32 0.0, %v477
  %v479 = vpop.f32.mrf.mxu0
  %v480 = vadd.f32 0.0, %v479
  %v481 = vpop.f32.mrf.mxu0
  %v482 = vadd.f32 0.0, %v481
  %483 = vdwg.mxu0
  %484 = vmatprep.subr.bf16.mxu0 0
  %485 = vmatpush1.bf16.msra.mxu0 0
  %486 = vmatprep.subr.bf16.mxu0 0
  %487 = vmatpush1.bf16.msra.mxu0 0
  %488 = vmatprep.subr.bf16.mxu0 0
  %489 = vmatpush1.bf16.msra.mxu0 0
  %490 = vmatprep.subr.bf16.mxu0 0
  %491 = vmatpush1.bf16.msra.mxu0 0
  %492 = vmatprep.subr.bf16.mxu0 0
  %493 = vmatpush1.bf16.msra.mxu0 0
  %494 = vmatprep.subr.bf16.mxu0 %v436
  %495 = vmatpush1.bf16.msra.mxu0 %v433
  %496 = vmatprep.subr.bf16.mxu0 %v368
  %497 = vmatpush1.bf16.msra.mxu0 %v367
  %498 = vmatprep.subr.bf16.mxu0 %v365
  %499 = vmatpush1.bf16.msra.mxu0 %v364
  %500 = vmatprep.subr.bf16.mxu0 0
  %501 = vmatpush2.bf16.msra.mxu0 0
  %502 = vmatprep.subr.bf16.mxu0 0
  %503 = vmatpush2.bf16.msra.mxu0 0
  %504 = vmatprep.subr.bf16.mxu0 0
  %505 = vmatpush2.bf16.msra.mxu0 0
  %506 = vmatprep.subr.bf16.mxu0 0
  %507 = vmatpush2.bf16.msra.mxu0 0
  %508 = vmatprep.subr.bf16.mxu0 0
  %509 = vmatpush2.bf16.msra.mxu0 0
  %510 = vmatprep.subr.bf16.mxu0 0
  %511 = vmatpush2.bf16.msra.mxu0 0
  %512 = vmatprep.subr.bf16.mxu0 0
  %513 = vmatpush2.bf16.msra.mxu0 0
  %514 = vmatprep.subr.bf16.mxu0 0
  %515 = vmatpush2.bf16.msra.mxu0 0
  %516 = vmatprep.mubr.bf16.mxu0 0
  %517 = vmatmul.mubr.bf16.gmra.mxu0 %v429
  %v518 = vpop.f32.mrf.mxu0
  %v519 = vadd.f32 %v476, %v518
  %v520 = vpop.f32.mrf.mxu0
  %v521 = vadd.f32 %v478, %v520
  %v522 = vpop.f32.mrf.mxu0
  %v523 = vadd.f32 %v480, %v522
  %v524 = vpop.f32.mrf.mxu0
  %v525 = vadd.f32 %v482, %v524
  %526 = vdwg.mxu0
  %527 = vmatprep.subr.bf16.mxu0 0
  %528 = vmatpush1.bf16.msra.mxu0 %v339
  %529 = vmatprep.subr.bf16.mxu0 0
  %530 = vmatpush1.bf16.msra.mxu0 %v336
  %531 = vmatprep.subr.bf16.mxu0 0
  %532 = vmatpush1.bf16.msra.mxu0 %v333
  %533 = vmatprep.subr.bf16.mxu0 0
  %534 = vmatpush1.bf16.msra.mxu0 %v330
  %535 = vmatprep.subr.bf16.mxu0 0
  %536 = vmatpush1.bf16.msra.mxu0 %v327
  %537 = vmatprep.subr.bf16.mxu0 0
  %538 = vmatpush1.bf16.msra.mxu0 %v324
  %539 = vmatprep.subr.bf16.mxu0 0
  %540 = vmatpush1.bf16.msra.mxu0 %v321
  %541 = vmatprep.subr.bf16.mxu0 0
  %542 = vmatpush1.bf16.msra.mxu0 %v318
  %543 = vmatprep.subr.bf16.mxu0 0
  %544 = vmatpush2.bf16.msra.mxu0 %v363
  %545 = vmatprep.subr.bf16.mxu0 0
  %546 = vmatpush2.bf16.msra.mxu0 %v360
  %547 = vmatprep.subr.bf16.mxu0 0
  %548 = vmatpush2.bf16.msra.mxu0 %v357
  %549 = vmatprep.subr.bf16.mxu0 0
  %550 = vmatpush2.bf16.msra.mxu0 %v354
  %551 = vmatprep.subr.bf16.mxu0 0
  %552 = vmatpush2.bf16.msra.mxu0 %v351
  %553 = vmatprep.subr.bf16.mxu0 0
  %554 = vmatpush2.bf16.msra.mxu0 %v348
  %555 = vmatprep.subr.bf16.mxu0 0
  %556 = vmatpush2.bf16.msra.mxu0 %v345
  %557 = vmatprep.subr.bf16.mxu0 0
  %558 = vmatpush2.bf16.msra.mxu0 %v342
  %559 = vmatprep.mubr.bf16.mxu0 %v122
  %560 = vmatmul.mubr.bf16.gmra.mxu0 %v121
  %v561 = vpop.f32.mrf.mxu0
  %v562 = vadd.f32 0.0, %v561
  %v563 = vpop.f32.mrf.mxu0
  %v564 = vpop.f32.mrf.mxu0
  %v565 = vadd.f32 0.0, %v564
  %v566 = vpop.f32.mrf.mxu0
  %567 = vdwg.mxu0
  %568 = vmatprep.subr.bf16.mxu0 0
  %569 = vmatpush1.bf16.msra.mxu0 0
  %570 = vmatprep.subr.bf16.mxu0 0
  %571 = vmatpush1.bf16.msra.mxu0 0
  %572 = vmatprep.subr.bf16.mxu0 0
  %573 = vmatpush1.bf16.msra.mxu0 0
  %574 = vmatprep.subr.bf16.mxu0 0
  %575 = vmatpush1.bf16.msra.mxu0 0
  %576 = vmatprep.subr.bf16.mxu0 0
  %577 = vmatpush1.bf16.msra.mxu0 0
  %578 = vmatprep.subr.bf16.mxu0 0
  %579 = vmatpush1.bf16.msra.mxu0 %v439
  %580 = vmatprep.subr.bf16.mxu0 0
  %581 = vmatpush1.bf16.msra.mxu0 %v369
  %582 = vmatprep.subr.bf16.mxu0 0
  %583 = vmatpush1.bf16.msra.mxu0 %v366
  %584 = vmatprep.subr.bf16.mxu0 0
  %585 = vmatpush2.bf16.msra.mxu0 0
  %586 = vmatprep.subr.bf16.mxu0 0
  %587 = vmatpush2.bf16.msra.mxu0 0
  %588 = vmatprep.subr.bf16.mxu0 0
  %589 = vmatpush2.bf16.msra.mxu0 0
  %590 = vmatprep.subr.bf16.mxu0 0
  %591 = vmatpush2.bf16.msra.mxu0 0
  %592 = vmatprep.subr.bf16.mxu0 0
  %593 = vmatpush2.bf16.msra.mxu0 0
  %594 = vmatprep.subr.bf16.mxu0 0
  %595 = vmatpush2.bf16.msra.mxu0 0
  %596 = vmatprep.subr.bf16.mxu0 0
  %597 = vmatpush2.bf16.msra.mxu0 0
  %598 = vmatprep.subr.bf16.mxu0 0
  %599 = vmatpush2.bf16.msra.mxu0 0
  %600 = vmatprep.mubr.bf16.mxu0 0
  %601 = vmatmul.mubr.bf16.gmra.mxu0 %v429
  %v602 = vpop.f32.mrf.mxu0
  %v603 = vadd.f32 %v562, %v602
  %v604 = vpop.f32.mrf.mxu0
  %v605 = vpop.f32.mrf.mxu0
  %v606 = vadd.f32 %v565, %v605
  %v607 = vpop.f32.mrf.mxu0
  %608 = vdwg.mxu0
  %v611 = vrot.slane %v519, 7
  %v612 = vrot.slane %v523, 7
  %vm615 = vcmask 1040384
  %v616 = vsel %vm615, 0.0, %v611
  %v617 = vsel %vm615, 0.0, %v612
  %v620 = vrot.slane %v603, 1
  %v621 = vrot.slane %v606, 1
  %vm624 = vcmask 1046528
  %v625 = vsel %vm624, %v620, 0.0
  %v626 = vsel %vm624, %v621, 0.0
  %v627 = vadd.f32 %v616, %v521
  %v628 = vadd.f32 %v617, %v525
  %v629 = vadd.f32 %v627, %v625
  %v630 = vadd.f32 %v628, %v626
  %v632 = vlaneseq
  %v633 = vshrl.u32 %v632, 7
  %v634 = vsub.s32 0, %v633
  %v635 = vrot.slane %v110, %v634
  %v637 = vadd.f32 %v629, %v635
  %v638 = vadd.f32 %v630, %v635
  %v639 = vmax.f32 %v637, 0.0
  %v640 = vmax.f32 %v638, 0.0
  %v641 = vrot.slane %v639, 4
  %v642 = vmax.f32 %v639, %v641
  %v643 = vrot.slane %v642, 2
  %v644 = vmax.f32 %v642, %v643
  %v645 = vrot.slane %v644, 1
  %v646 = vmax.f32 %v644, %v645
  %v647 = vrot.slane %v640, 4
  %v648 = vmax.f32 %v640, %v647
  %v649 = vrot.slane %v648, 2
  %v650 = vmax.f32 %v648, %v649
  %v651 = vrot.slane %v650, 1
  %v652 = vmax.f32 %v650, %v651
  %vm655 = vcmask 1041409
  %v656 = vsel %vm655, %v652, %v646
  %658 = vst [vmem:[%s7] sm:$0x3] %v656
  %v659 = vld [vmem:[%s1] sm:$0xff]
  %v660 = vld [vmem:[%s1 + $0x8] sm:$0xf]
  %v661 = vld [vmem:[%s1 + $0xc] sm:$0xff]
  %v662 = vld [vmem:[%s1 + $0x14] sm:$0xf]
  %v663 = vld [vmem:[%s4] sm:$0xff]
  %v664 = vld [vmem:[%s4 + $0x8] sm:$0xf]
  %v665 = vld [vmem:[%s4 + $0xc] sm:$0xff]
  %v666 = vld [vmem:[%s4 + $0x14] sm:$0xf]
  %v667 = vld [vmem:[%s4 + $0x18] sm:$0xff]
  %v668 = vld [vmem:[%s4 + $0x20] sm:$0xf]
  %v669 = vld [vmem:[%s4 + $0x24] sm:$0xff]
  %v670 = vld [vmem:[%s4 + $0x2c] sm:$0xf]
  %v671 = vld [vmem:[%s4 + $0x30] sm:$0xff]
  %v672 = vld [vmem:[%s4 + $0x38] sm:$0xf]
  %v673 = vld [vmem:[%s4 + $0x3c] sm:$0xff]
  %v674 = vld [vmem:[%s4 + $0x44] sm:$0xf]
  %v675 = vld [vmem:[%s4 + $0x48] sm:$0xff]
  %v676 = vld [vmem:[%s4 + $0x50] sm:$0xf]
  %v677 = vld [vmem:[%s4 + $0x54] sm:$0xff]
  %v678 = vld [vmem:[%s4 + $0x5c] sm:$0xf]
  %v679 = vld [vmem:[%s4 + $0x60] sm:$0xff]
  %v680 = vld [vmem:[%s4 + $0x68] sm:$0xf]
  %v681 = vld [vmem:[%s4 + $0x6c] sm:$0xff]
  %v682 = vld [vmem:[%s4 + $0x74] sm:$0xf]
  %v683 = vld [vmem:[%s4 + $0x78] sm:$0xff]
  %v684 = vld [vmem:[%s4 + $0x80] sm:$0xf]
  %v685 = vld [vmem:[%s4 + $0x84] sm:$0xff]
  %v686 = vld [vmem:[%s4 + $0x8c] sm:$0xf]
  %v687 = vld [vmem:[%s4 + $0x90] sm:$0xff]
  %v688 = vld [vmem:[%s4 + $0x98] sm:$0xf]
  %v689 = vld [vmem:[%s4 + $0x9c] sm:$0xff]
  %v690 = vld [vmem:[%s4 + $0xa4] sm:$0xf]
  %v691 = vld [vmem:[%s4 + $0xa8] sm:$0xff]
  %v692 = vld [vmem:[%s4 + $0xb0] sm:$0xf]
  %v693 = vld [vmem:[%s4 + $0xb4] sm:$0xff]
  %v694 = vld [vmem:[%s4 + $0xbc] sm:$0xf]
  %v695 = vld [vmem:[%s4 + $0xc0] sm:$0xff]
  %v696 = vld [vmem:[%s4 + $0xc8] sm:$0xf]
  %v697 = vld [vmem:[%s4 + $0xcc] sm:$0xff]
  %v698 = vld [vmem:[%s4 + $0xd4] sm:$0xf]
  %v699 = vld [vmem:[%s4 + $0xd8] sm:$0xff]
  %v700 = vld [vmem:[%s4 + $0xe0] sm:$0xf]
  %v701 = vld [vmem:[%s4 + $0xe4] sm:$0xff]
  %v702 = vld [vmem:[%s4 + $0xec] sm:$0xf]
  %v703 = vld [vmem:[%s4 + $0xf0] sm:$0xff]
  %v704 = vld [vmem:[%s4 + $0xf8] sm:$0xf]
  %v705 = vld [vmem:[%s4 + $0xfc] sm:$0xff]
  %v706 = vld [vmem:[%s4 + $0x104] sm:$0xf]
  %v707 = vld [vmem:[%s4 + $0x108] sm:$0xff]
  %v708 = vld [vmem:[%s4 + $0x110] sm:$0xf]
  %v709 = vld [vmem:[%s4 + $0x114] sm:$0xff]
  %v710 = vld [vmem:[%s4 + $0x11c] sm:$0xf]
  %v711 = vld [vmem:[%s4 + $0x120] sm:$0xff]
  %v712 = vld [vmem:[%s4 + $0x128] sm:$0xf]
  %v713 = vld [vmem:[%s4 + $0x12c] sm:$0xff]
  %v714 = vld [vmem:[%s4 + $0x134] sm:$0xf]
  %v715 = vld [vmem:[%s4 + $0x138] sm:$0xff]
  %v716 = vld [vmem:[%s4 + $0x140] sm:$0xf]
  %v717 = vld [vmem:[%s4 + $0x144] sm:$0xff]
  %v718 = vld [vmem:[%s4 + $0x14c] sm:$0xf]
  %v719 = vld [vmem:[%s4 + $0x150] sm:$0xff]
  %v720 = vld [vmem:[%s4 + $0x158] sm:$0xf]
  %v721 = vld [vmem:[%s4 + $0x15c] sm:$0xff]
  %v722 = vld [vmem:[%s4 + $0x164] sm:$0xf]
  %v723 = vld [vmem:[%s4 + $0x168] sm:$0xff]
  %v724 = vld [vmem:[%s4 + $0x170] sm:$0xf]
  %v725 = vld [vmem:[%s4 + $0x174] sm:$0xff]
  %v726 = vld [vmem:[%s4 + $0x17c] sm:$0xf]
  %v727 = vld [vmem:[%s4 + $0x180] sm:$0xff]
  %v728 = vld [vmem:[%s4 + $0x188] sm:$0xf]
  %v729 = vld [vmem:[%s4 + $0x18c] sm:$0xff]
  %v730 = vld [vmem:[%s4 + $0x194] sm:$0xf]
  %v731 = vld [vmem:[%s4 + $0x198] sm:$0xff]
  %v732 = vld [vmem:[%s4 + $0x1a0] sm:$0xf]
  %v733 = vld [vmem:[%s4 + $0x1a4] sm:$0xff]
  %v734 = vld [vmem:[%s4 + $0x1ac] sm:$0xf]
  %v735 = vld [vmem:[%s4 + $0x1b0] sm:$0xff]
  %v736 = vld [vmem:[%s4 + $0x1b8] sm:$0xf]
  %v737 = vld [vmem:[%s4 + $0x1bc] sm:$0x33]
  %v738 = vld [vmem:[%s4 + $0x1c4] sm:$0x3]
  %v739 = vld [vmem:[%s6] sm:$0x1]
  %v744 = vunpack.c.l.b16 %v659
  %v745 = vunpack.c.h.b16 %v659
  %v746 = vunpack.c.l.b16 %v660
  %v747 = vunpack.c.l.b16 %v661
  %v748 = vunpack.c.h.b16 %v661
  %v749 = vunpack.c.l.b16 %v662
  %v750 = vpack.c.b16 %v747, %v744
  %v751 = vpack.c.b16 %v748, %v745
  %v752 = vpack.c.b16 %v749, %v746
  %v831 = vunpack.c.l.b16 %v663
  %v832 = vunpack.c.h.b16 %v663
  %v833 = vunpack.c.l.b16 %v664
  %v834 = vunpack.c.l.b16 %v665
  %v835 = vunpack.c.h.b16 %v665
  %v836 = vunpack.c.l.b16 %v666
  %v837 = vunpack.c.l.b16 %v667
  %v838 = vunpack.c.h.b16 %v667
  %v839 = vunpack.c.l.b16 %v668
  %v840 = vunpack.c.l.b16 %v669
  %v841 = vunpack.c.h.b16 %v669
  %v842 = vunpack.c.l.b16 %v670
  %v843 = vunpack.c.l.b16 %v671
  %v844 = vunpack.c.h.b16 %v671
  %v845 = vunpack.c.l.b16 %v672
  %v846 = vunpack.c.l.b16 %v673
  %v847 = vunpack.c.h.b16 %v673
  %v848 = vunpack.c.l.b16 %v674
  %v849 = vunpack.c.l.b16 %v675
  %v850 = vunpack.c.h.b16 %v675
  %v851 = vunpack.c.l.b16 %v676
  %v852 = vunpack.c.l.b16 %v677
  %v853 = vunpack.c.h.b16 %v677
  %v854 = vunpack.c.l.b16 %v678
  %v855 = vunpack.c.l.b16 %v679
  %v856 = vunpack.c.h.b16 %v679
  %v857 = vunpack.c.l.b16 %v680
  %v858 = vunpack.c.l.b16 %v681
  %v859 = vunpack.c.h.b16 %v681
  %v860 = vunpack.c.l.b16 %v682
  %v861 = vunpack.c.l.b16 %v683
  %v862 = vunpack.c.h.b16 %v683
  %v863 = vunpack.c.l.b16 %v684
  %v864 = vunpack.c.l.b16 %v685
  %v865 = vunpack.c.h.b16 %v685
  %v866 = vunpack.c.l.b16 %v686
  %v867 = vunpack.c.l.b16 %v687
  %v868 = vunpack.c.h.b16 %v687
  %v869 = vunpack.c.l.b16 %v688
  %v870 = vunpack.c.l.b16 %v689
  %v871 = vunpack.c.h.b16 %v689
  %v872 = vunpack.c.l.b16 %v690
  %v873 = vunpack.c.l.b16 %v691
  %v874 = vunpack.c.h.b16 %v691
  %v875 = vunpack.c.l.b16 %v692
  %v876 = vunpack.c.l.b16 %v693
  %v877 = vunpack.c.h.b16 %v693
  %v878 = vunpack.c.l.b16 %v694
  %v879 = vunpack.c.l.b16 %v695
  %v880 = vunpack.c.h.b16 %v695
  %v881 = vunpack.c.l.b16 %v696
  %v882 = vunpack.c.l.b16 %v697
  %v883 = vunpack.c.h.b16 %v697
  %v884 = vunpack.c.l.b16 %v698
  %v885 = vunpack.c.l.b16 %v699
  %v886 = vunpack.c.h.b16 %v699
  %v887 = vunpack.c.l.b16 %v700
  %v888 = vunpack.c.l.b16 %v701
  %v889 = vunpack.c.h.b16 %v701
  %v890 = vunpack.c.l.b16 %v702
  %v891 = vunpack.c.l.b16 %v703
  %v892 = vunpack.c.h.b16 %v703
  %v893 = vunpack.c.l.b16 %v704
  %v894 = vunpack.c.l.b16 %v705
  %v895 = vunpack.c.h.b16 %v705
  %v896 = vunpack.c.l.b16 %v706
  %v897 = vunpack.c.l.b16 %v707
  %v898 = vunpack.c.h.b16 %v707
  %v899 = vunpack.c.l.b16 %v708
  %v900 = vunpack.c.l.b16 %v709
  %v901 = vunpack.c.h.b16 %v709
  %v902 = vunpack.c.l.b16 %v710
  %v903 = vunpack.c.l.b16 %v711
  %v904 = vunpack.c.h.b16 %v711
  %v905 = vunpack.c.l.b16 %v712
  %v906 = vunpack.c.l.b16 %v713
  %v907 = vunpack.c.h.b16 %v713
  %v908 = vunpack.c.l.b16 %v714
  %v909 = vunpack.c.l.b16 %v715
  %v910 = vunpack.c.h.b16 %v715
  %v911 = vunpack.c.l.b16 %v716
  %v912 = vunpack.c.l.b16 %v717
  %v913 = vunpack.c.h.b16 %v717
  %v914 = vunpack.c.l.b16 %v718
  %v915 = vunpack.c.l.b16 %v719
  %v916 = vunpack.c.h.b16 %v719
  %v917 = vunpack.c.l.b16 %v720
  %v918 = vunpack.c.l.b16 %v721
  %v919 = vunpack.c.h.b16 %v721
  %v920 = vunpack.c.l.b16 %v722
  %v921 = vunpack.c.l.b16 %v723
  %v922 = vunpack.c.h.b16 %v723
  %v923 = vunpack.c.l.b16 %v724
  %v924 = vunpack.c.l.b16 %v725
  %v925 = vunpack.c.h.b16 %v725
  %v926 = vunpack.c.l.b16 %v726
  %v927 = vunpack.c.l.b16 %v727
  %v928 = vunpack.c.h.b16 %v727
  %v929 = vunpack.c.l.b16 %v728
  %v930 = vunpack.c.l.b16 %v729
  %v931 = vunpack.c.h.b16 %v729
  %v932 = vunpack.c.l.b16 %v730
  %v933 = vunpack.c.l.b16 %v731
  %v934 = vunpack.c.h.b16 %v731
  %v935 = vunpack.c.l.b16 %v732
  %v936 = vunpack.c.l.b16 %v733
  %v937 = vunpack.c.h.b16 %v733
  %v938 = vunpack.c.l.b16 %v734
  %v939 = vunpack.c.l.b16 %v735
  %v940 = vunpack.c.h.b16 %v735
  %v941 = vunpack.c.l.b16 %v736
  %v942 = vunpack.c.l.b16 %v737
  %v943 = vunpack.c.h.b16 %v737
  %v944 = vunpack.c.l.b16 %v738
  %v945 = vpack.c.b16 %v834, %v831
  %v946 = vpack.c.b16 %v835, %v832
  %v947 = vpack.c.b16 %v836, %v833
  %v948 = vpack.c.b16 %v840, %v837
  %v949 = vpack.c.b16 %v841, %v838
  %v950 = vpack.c.b16 %v842, %v839
  %v951 = vpack.c.b16 %v846, %v843
  %v952 = vpack.c.b16 %v847, %v844
  %v953 = vpack.c.b16 %v848, %v845
  %v954 = vpack.c.b16 %v852, %v849
  %v955 = vpack.c.b16 %v853, %v850
  %v956 = vpack.c.b16 %v854, %v851
  %v957 = vpack.c.b16 %v858, %v855
  %v958 = vpack.c.b16 %v859, %v856
  %v959 = vpack.c.b16 %v860, %v857
  %v960 = vpack.c.b16 %v864, %v861
  %v961 = vpack.c.b16 %v865, %v862
  %v962 = vpack.c.b16 %v866, %v863
  %v963 = vpack.c.b16 %v870, %v867
  %v964 = vpack.c.b16 %v871, %v868
  %v965 = vpack.c.b16 %v872, %v869
  %v966 = vpack.c.b16 %v876, %v873
  %v967 = vpack.c.b16 %v877, %v874
  %v968 = vpack.c.b16 %v878, %v875
  %v969 = vpack.c.b16 %v882, %v879
  %v970 = vpack.c.b16 %v883, %v880
  %v971 = vpack.c.b16 %v884, %v881
  %v972 = vpack.c.b16 %v888, %v885
  %v973 = vpack.c.b16 %v889, %v886
  %v974 = vpack.c.b16 %v890, %v887
  %v975 = vpack.c.b16 %v894, %v891
  %v976 = vpack.c.b16 %v895, %v892
  %v977 = vpack.c.b16 %v896, %v893
  %v978 = vpack.c.b16 %v900, %v897
  %v979 = vpack.c.b16 %v901, %v898
  %v980 = vpack.c.b16 %v902, %v899
  %v981 = vpack.c.b16 %v906, %v903
  %v982 = vpack.c.b16 %v907, %v904
  %v983 = vpack.c.b16 %v908, %v905
  %v984 = vpack.c.b16 %v912, %v909
  %v985 = vpack.c.b16 %v913, %v910
  %v986 = vpack.c.b16 %v914, %v911
  %v987 = vpack.c.b16 %v918, %v915
  %v988 = vpack.c.b16 %v919, %v916
  %v989 = vpack.c.b16 %v920, %v917
  %v990 = vpack.c.b16 %v924, %v921
  %v991 = vpack.c.b16 %v925, %v922
  %v992 = vpack.c.b16 %v926, %v923
  %v993 = vpack.c.b16 %v930, %v927
  %v994 = vpack.c.b16 %v931, %v928
  %v995 = vpack.c.b16 %v932, %v929
  %v996 = vpack.c.b16 %v936, %v933
  %v997 = vpack.c.b16 %v937, %v934
  %v998 = vpack.c.b16 %v938, %v935
  %v999 = vpack.c.b16 %v942, %v939
  %v1000 = vpack.c.b16 %v943, %v940
  %v1001 = vpack.c.b16 %v944, %v941
  %v1057 = vsel %vm427, %v752, 0
  %v1060 = vsel %vm431, %v999, 0
  %v1063 = vsel %vm431, %v1000, 0
  %v1066 = vsel %vm431, %v1001, 0
  %1068 = vmatprep.subr.bf16.mxu0 %v967
  %1069 = vmatpush1.bf16.msra.mxu0 %v966
  %1070 = vmatprep.subr.bf16.mxu0 %v964
  %1071 = vmatpush1.bf16.msra.mxu0 %v963
  %1072 = vmatprep.subr.bf16.mxu0 %v961
  %1073 = vmatpush1.bf16.msra.mxu0 %v960
  %1074 = vmatprep.subr.bf16.mxu0 %v958
  %1075 = vmatpush1.bf16.msra.mxu0 %v957
  %1076 = vmatprep.subr.bf16.mxu0 %v955
  %1077 = vmatpush1.bf16.msra.mxu0 %v954
  %1078 = vmatprep.subr.bf16.mxu0 %v952
  %1079 = vmatpush1.bf16.msra.mxu0 %v951
  %1080 = vmatprep.subr.bf16.mxu0 %v949
  %1081 = vmatpush1.bf16.msra.mxu0 %v948
  %1082 = vmatprep.subr.bf16.mxu0 %v946
  %1083 = vmatpush1.bf16.msra.mxu0 %v945
  %1084 = vmatprep.subr.bf16.mxu0 %v991
  %1085 = vmatpush2.bf16.msra.mxu0 %v990
  %1086 = vmatprep.subr.bf16.mxu0 %v988
  %1087 = vmatpush2.bf16.msra.mxu0 %v987
  %1088 = vmatprep.subr.bf16.mxu0 %v985
  %1089 = vmatpush2.bf16.msra.mxu0 %v984
  %1090 = vmatprep.subr.bf16.mxu0 %v982
  %1091 = vmatpush2.bf16.msra.mxu0 %v981
  %1092 = vmatprep.subr.bf16.mxu0 %v979
  %1093 = vmatpush2.bf16.msra.mxu0 %v978
  %1094 = vmatprep.subr.bf16.mxu0 %v976
  %1095 = vmatpush2.bf16.msra.mxu0 %v975
  %1096 = vmatprep.subr.bf16.mxu0 %v973
  %1097 = vmatpush2.bf16.msra.mxu0 %v972
  %1098 = vmatprep.subr.bf16.mxu0 %v970
  %1099 = vmatpush2.bf16.msra.mxu0 %v969
  %1100 = vmatprep.mubr.bf16.mxu0 %v751
  %1101 = vmatmul.mubr.bf16.gmra.mxu0 %v750
  %v1102 = vpop.f32.mrf.mxu0
  %v1103 = vadd.f32 0.0, %v1102
  %v1104 = vpop.f32.mrf.mxu0
  %v1105 = vadd.f32 0.0, %v1104
  %v1106 = vpop.f32.mrf.mxu0
  %v1107 = vadd.f32 0.0, %v1106
  %v1108 = vpop.f32.mrf.mxu0
  %v1109 = vadd.f32 0.0, %v1108
  %1110 = vdwg.mxu0
  %1111 = vmatprep.subr.bf16.mxu0 0
  %1112 = vmatpush1.bf16.msra.mxu0 0
  %1113 = vmatprep.subr.bf16.mxu0 0
  %1114 = vmatpush1.bf16.msra.mxu0 0
  %1115 = vmatprep.subr.bf16.mxu0 0
  %1116 = vmatpush1.bf16.msra.mxu0 0
  %1117 = vmatprep.subr.bf16.mxu0 0
  %1118 = vmatpush1.bf16.msra.mxu0 0
  %1119 = vmatprep.subr.bf16.mxu0 0
  %1120 = vmatpush1.bf16.msra.mxu0 0
  %1121 = vmatprep.subr.bf16.mxu0 %v1063
  %1122 = vmatpush1.bf16.msra.mxu0 %v1060
  %1123 = vmatprep.subr.bf16.mxu0 %v997
  %1124 = vmatpush1.bf16.msra.mxu0 %v996
  %1125 = vmatprep.subr.bf16.mxu0 %v994
  %1126 = vmatpush1.bf16.msra.mxu0 %v993
  %1127 = vmatprep.subr.bf16.mxu0 0
  %1128 = vmatpush2.bf16.msra.mxu0 0
  %1129 = vmatprep.subr.bf16.mxu0 0
  %1130 = vmatpush2.bf16.msra.mxu0 0
  %1131 = vmatprep.subr.bf16.mxu0 0
  %1132 = vmatpush2.bf16.msra.mxu0 0
  %1133 = vmatprep.subr.bf16.mxu0 0
  %1134 = vmatpush2.bf16.msra.mxu0 0
  %1135 = vmatprep.subr.bf16.mxu0 0
  %1136 = vmatpush2.bf16.msra.mxu0 0
  %1137 = vmatprep.subr.bf16.mxu0 0
  %1138 = vmatpush2.bf16.msra.mxu0 0
  %1139 = vmatprep.subr.bf16.mxu0 0
  %1140 = vmatpush2.bf16.msra.mxu0 0
  %1141 = vmatprep.subr.bf16.mxu0 0
  %1142 = vmatpush2.bf16.msra.mxu0 0
  %1143 = vmatprep.mubr.bf16.mxu0 0
  %1144 = vmatmul.mubr.bf16.gmra.mxu0 %v1057
  %v1145 = vpop.f32.mrf.mxu0
  %v1146 = vadd.f32 %v1103, %v1145
  %v1147 = vpop.f32.mrf.mxu0
  %v1148 = vadd.f32 %v1105, %v1147
  %v1149 = vpop.f32.mrf.mxu0
  %v1150 = vadd.f32 %v1107, %v1149
  %v1151 = vpop.f32.mrf.mxu0
  %v1152 = vadd.f32 %v1109, %v1151
  %1153 = vdwg.mxu0
  %1154 = vmatprep.subr.bf16.mxu0 0
  %1155 = vmatpush1.bf16.msra.mxu0 %v968
  %1156 = vmatprep.subr.bf16.mxu0 0
  %1157 = vmatpush1.bf16.msra.mxu0 %v965
  %1158 = vmatprep.subr.bf16.mxu0 0
  %1159 = vmatpush1.bf16.msra.mxu0 %v962
  %1160 = vmatprep.subr.bf16.mxu0 0
  %1161 = vmatpush1.bf16.msra.mxu0 %v959
  %1162 = vmatprep.subr.bf16.mxu0 0
  %1163 = vmatpush1.bf16.msra.mxu0 %v956
  %1164 = vmatprep.subr.bf16.mxu0 0
  %1165 = vmatpush1.bf16.msra.mxu0 %v953
  %1166 = vmatprep.subr.bf16.mxu0 0
  %1167 = vmatpush1.bf16.msra.mxu0 %v950
  %1168 = vmatprep.subr.bf16.mxu0 0
  %1169 = vmatpush1.bf16.msra.mxu0 %v947
  %1170 = vmatprep.subr.bf16.mxu0 0
  %1171 = vmatpush2.bf16.msra.mxu0 %v992
  %1172 = vmatprep.subr.bf16.mxu0 0
  %1173 = vmatpush2.bf16.msra.mxu0 %v989
  %1174 = vmatprep.subr.bf16.mxu0 0
  %1175 = vmatpush2.bf16.msra.mxu0 %v986
  %1176 = vmatprep.subr.bf16.mxu0 0
  %1177 = vmatpush2.bf16.msra.mxu0 %v983
  %1178 = vmatprep.subr.bf16.mxu0 0
  %1179 = vmatpush2.bf16.msra.mxu0 %v980
  %1180 = vmatprep.subr.bf16.mxu0 0
  %1181 = vmatpush2.bf16.msra.mxu0 %v977
  %1182 = vmatprep.subr.bf16.mxu0 0
  %1183 = vmatpush2.bf16.msra.mxu0 %v974
  %1184 = vmatprep.subr.bf16.mxu0 0
  %1185 = vmatpush2.bf16.msra.mxu0 %v971
  %1186 = vmatprep.mubr.bf16.mxu0 %v751
  %1187 = vmatmul.mubr.bf16.gmra.mxu0 %v750
  %v1188 = vpop.f32.mrf.mxu0
  %v1189 = vadd.f32 0.0, %v1188
  %v1190 = vpop.f32.mrf.mxu0
  %v1191 = vpop.f32.mrf.mxu0
  %v1192 = vadd.f32 0.0, %v1191
  %v1193 = vpop.f32.mrf.mxu0
  %1194 = vdwg.mxu0
  %1195 = vmatprep.subr.bf16.mxu0 0
  %1196 = vmatpush1.bf16.msra.mxu0 0
  %1197 = vmatprep.subr.bf16.mxu0 0
  %1198 = vmatpush1.bf16.msra.mxu0 0
  %1199 = vmatprep.subr.bf16.mxu0 0
  %1200 = vmatpush1.bf16.msra.mxu0 0
  %1201 = vmatprep.subr.bf16.mxu0 0
  %1202 = vmatpush1.bf16.msra.mxu0 0
  %1203 = vmatprep.subr.bf16.mxu0 0
  %1204 = vmatpush1.bf16.msra.mxu0 0
  %1205 = vmatprep.subr.bf16.mxu0 0
  %1206 = vmatpush1.bf16.msra.mxu0 %v1066
  %1207 = vmatprep.subr.bf16.mxu0 0
  %1208 = vmatpush1.bf16.msra.mxu0 %v998
  %1209 = vmatprep.subr.bf16.mxu0 0
  %1210 = vmatpush1.bf16.msra.mxu0 %v995
  %1211 = vmatprep.subr.bf16.mxu0 0
  %1212 = vmatpush2.bf16.msra.mxu0 0
  %1213 = vmatprep.subr.bf16.mxu0 0
  %1214 = vmatpush2.bf16.msra.mxu0 0
  %1215 = vmatprep.subr.bf16.mxu0 0
  %1216 = vmatpush2.bf16.msra.mxu0 0
  %1217 = vmatprep.subr.bf16.mxu0 0
  %1218 = vmatpush2.bf16.msra.mxu0 0
  %1219 = vmatprep.subr.bf16.mxu0 0
  %1220 = vmatpush2.bf16.msra.mxu0 0
  %1221 = vmatprep.subr.bf16.mxu0 0
  %1222 = vmatpush2.bf16.msra.mxu0 0
  %1223 = vmatprep.subr.bf16.mxu0 0
  %1224 = vmatpush2.bf16.msra.mxu0 0
  %1225 = vmatprep.subr.bf16.mxu0 0
  %1226 = vmatpush2.bf16.msra.mxu0 0
  %1227 = vmatprep.mubr.bf16.mxu0 0
  %1228 = vmatmul.mubr.bf16.gmra.mxu0 %v1057
  %v1229 = vpop.f32.mrf.mxu0
  %v1230 = vadd.f32 %v1189, %v1229
  %v1231 = vpop.f32.mrf.mxu0
  %v1232 = vpop.f32.mrf.mxu0
  %v1233 = vadd.f32 %v1192, %v1232
  %v1234 = vpop.f32.mrf.mxu0
  %1235 = vdwg.mxu0
  %v1238 = vrot.slane %v1146, 7
  %v1239 = vrot.slane %v1150, 7
  %v1242 = vsel %vm615, 0.0, %v1238
  %v1243 = vsel %vm615, 0.0, %v1239
  %v1246 = vrot.slane %v1230, 1
  %v1247 = vrot.slane %v1233, 1
  %v1250 = vsel %vm624, %v1246, 0.0
  %v1251 = vsel %vm624, %v1247, 0.0
  %v1252 = vadd.f32 %v1242, %v1148
  %v1253 = vadd.f32 %v1243, %v1152
  %v1254 = vadd.f32 %v1252, %v1250
  %v1255 = vadd.f32 %v1253, %v1251
  %v1257 = vlaneseq
  %v1258 = vshrl.u32 %v1257, 7
  %v1259 = vsub.s32 0, %v1258
  %v1260 = vrot.slane %v739, %v1259
  %v1262 = vadd.f32 %v1254, %v1260
  %v1263 = vadd.f32 %v1255, %v1260
  %v1264 = vmax.f32 %v1262, 0.0
  %v1265 = vmax.f32 %v1263, 0.0
  %v1266 = vrot.slane %v1264, 4
  %v1267 = vmax.f32 %v1264, %v1266
  %v1268 = vrot.slane %v1267, 2
  %v1269 = vmax.f32 %v1267, %v1268
  %v1270 = vrot.slane %v1269, 1
  %v1271 = vmax.f32 %v1269, %v1270
  %v1272 = vrot.slane %v1265, 4
  %v1273 = vmax.f32 %v1265, %v1272
  %v1274 = vrot.slane %v1273, 2
  %v1275 = vmax.f32 %v1273, %v1274
  %v1276 = vrot.slane %v1275, 1
  %v1277 = vmax.f32 %v1275, %v1276
  %v1280 = vsel %vm655, %v1277, %v1271
  %1282 = vst [vmem:[%s8] sm:$0x3] %v1280
  %v1283 = vld [vmem:[%s2] sm:$0xff]
  %v1284 = vld [vmem:[%s2 + $0x8] sm:$0xf]
  %v1285 = vld [vmem:[%s2 + $0xc] sm:$0xff]
  %v1286 = vld [vmem:[%s2 + $0x14] sm:$0xf]
  %v1287 = vld [vmem:[%s4] sm:$0xff]
  %v1288 = vld [vmem:[%s4 + $0x8] sm:$0xf]
  %v1289 = vld [vmem:[%s4 + $0xc] sm:$0xff]
  %v1290 = vld [vmem:[%s4 + $0x14] sm:$0xf]
  %v1291 = vld [vmem:[%s4 + $0x18] sm:$0xff]
  %v1292 = vld [vmem:[%s4 + $0x20] sm:$0xf]
  %v1293 = vld [vmem:[%s4 + $0x24] sm:$0xff]
  %v1294 = vld [vmem:[%s4 + $0x2c] sm:$0xf]
  %v1295 = vld [vmem:[%s4 + $0x30] sm:$0xff]
  %v1296 = vld [vmem:[%s4 + $0x38] sm:$0xf]
  %v1297 = vld [vmem:[%s4 + $0x3c] sm:$0xff]
  %v1298 = vld [vmem:[%s4 + $0x44] sm:$0xf]
  %v1299 = vld [vmem:[%s4 + $0x48] sm:$0xff]
  %v1300 = vld [vmem:[%s4 + $0x50] sm:$0xf]
  %v1301 = vld [vmem:[%s4 + $0x54] sm:$0xff]
  %v1302 = vld [vmem:[%s4 + $0x5c] sm:$0xf]
  %v1303 = vld [vmem:[%s4 + $0x60] sm:$0xff]
  %v1304 = vld [vmem:[%s4 + $0x68] sm:$0xf]
  %v1305 = vld [vmem:[%s4 + $0x6c] sm:$0xff]
  %v1306 = vld [vmem:[%s4 + $0x74] sm:$0xf]
  %v1307 = vld [vmem:[%s4 + $0x78] sm:$0xff]
  %v1308 = vld [vmem:[%s4 + $0x80] sm:$0xf]
  %v1309 = vld [vmem:[%s4 + $0x84] sm:$0xff]
  %v1310 = vld [vmem:[%s4 + $0x8c] sm:$0xf]
  %v1311 = vld [vmem:[%s4 + $0x90] sm:$0xff]
  %v1312 = vld [vmem:[%s4 + $0x98] sm:$0xf]
  %v1313 = vld [vmem:[%s4 + $0x9c] sm:$0xff]
  %v1314 = vld [vmem:[%s4 + $0xa4] sm:$0xf]
  %v1315 = vld [vmem:[%s4 + $0xa8] sm:$0xff]
  %v1316 = vld [vmem:[%s4 + $0xb0] sm:$0xf]
  %v1317 = vld [vmem:[%s4 + $0xb4] sm:$0xff]
  %v1318 = vld [vmem:[%s4 + $0xbc] sm:$0xf]
  %v1319 = vld [vmem:[%s4 + $0xc0] sm:$0xff]
  %v1320 = vld [vmem:[%s4 + $0xc8] sm:$0xf]
  %v1321 = vld [vmem:[%s4 + $0xcc] sm:$0xff]
  %v1322 = vld [vmem:[%s4 + $0xd4] sm:$0xf]
  %v1323 = vld [vmem:[%s4 + $0xd8] sm:$0xff]
  %v1324 = vld [vmem:[%s4 + $0xe0] sm:$0xf]
  %v1325 = vld [vmem:[%s4 + $0xe4] sm:$0xff]
  %v1326 = vld [vmem:[%s4 + $0xec] sm:$0xf]
  %v1327 = vld [vmem:[%s4 + $0xf0] sm:$0xff]
  %v1328 = vld [vmem:[%s4 + $0xf8] sm:$0xf]
  %v1329 = vld [vmem:[%s4 + $0xfc] sm:$0xff]
  %v1330 = vld [vmem:[%s4 + $0x104] sm:$0xf]
  %v1331 = vld [vmem:[%s4 + $0x108] sm:$0xff]
  %v1332 = vld [vmem:[%s4 + $0x110] sm:$0xf]
  %v1333 = vld [vmem:[%s4 + $0x114] sm:$0xff]
  %v1334 = vld [vmem:[%s4 + $0x11c] sm:$0xf]
  %v1335 = vld [vmem:[%s4 + $0x120] sm:$0xff]
  %v1336 = vld [vmem:[%s4 + $0x128] sm:$0xf]
  %v1337 = vld [vmem:[%s4 + $0x12c] sm:$0xff]
  %v1338 = vld [vmem:[%s4 + $0x134] sm:$0xf]
  %v1339 = vld [vmem:[%s4 + $0x138] sm:$0xff]
  %v1340 = vld [vmem:[%s4 + $0x140] sm:$0xf]
  %v1341 = vld [vmem:[%s4 + $0x144] sm:$0xff]
  %v1342 = vld [vmem:[%s4 + $0x14c] sm:$0xf]
  %v1343 = vld [vmem:[%s4 + $0x150] sm:$0xff]
  %v1344 = vld [vmem:[%s4 + $0x158] sm:$0xf]
  %v1345 = vld [vmem:[%s4 + $0x15c] sm:$0xff]
  %v1346 = vld [vmem:[%s4 + $0x164] sm:$0xf]
  %v1347 = vld [vmem:[%s4 + $0x168] sm:$0xff]
  %v1348 = vld [vmem:[%s4 + $0x170] sm:$0xf]
  %v1349 = vld [vmem:[%s4 + $0x174] sm:$0xff]
  %v1350 = vld [vmem:[%s4 + $0x17c] sm:$0xf]
  %v1351 = vld [vmem:[%s4 + $0x180] sm:$0xff]
  %v1352 = vld [vmem:[%s4 + $0x188] sm:$0xf]
  %v1353 = vld [vmem:[%s4 + $0x18c] sm:$0xff]
  %v1354 = vld [vmem:[%s4 + $0x194] sm:$0xf]
  %v1355 = vld [vmem:[%s4 + $0x198] sm:$0xff]
  %v1356 = vld [vmem:[%s4 + $0x1a0] sm:$0xf]
  %v1357 = vld [vmem:[%s4 + $0x1a4] sm:$0xff]
  %v1358 = vld [vmem:[%s4 + $0x1ac] sm:$0xf]
  %v1359 = vld [vmem:[%s4 + $0x1b0] sm:$0xff]
  %v1360 = vld [vmem:[%s4 + $0x1b8] sm:$0xf]
  %v1361 = vld [vmem:[%s4 + $0x1bc] sm:$0x33]
  %v1362 = vld [vmem:[%s4 + $0x1c4] sm:$0x3]
  %v1363 = vld [vmem:[%s6] sm:$0x1]
  %v1368 = vunpack.c.l.b16 %v1283
  %v1369 = vunpack.c.h.b16 %v1283
  %v1370 = vunpack.c.l.b16 %v1284
  %v1371 = vunpack.c.l.b16 %v1285
  %v1372 = vunpack.c.h.b16 %v1285
  %v1373 = vunpack.c.l.b16 %v1286
  %v1374 = vpack.c.b16 %v1371, %v1368
  %v1375 = vpack.c.b16 %v1372, %v1369
  %v1376 = vpack.c.b16 %v1373, %v1370
  %v1455 = vunpack.c.l.b16 %v1287
  %v1456 = vunpack.c.h.b16 %v1287
  %v1457 = vunpack.c.l.b16 %v1288
  %v1458 = vunpack.c.l.b16 %v1289
  %v1459 = vunpack.c.h.b16 %v1289
  %v1460 = vunpack.c.l.b16 %v1290
  %v1461 = vunpack.c.l.b16 %v1291
  %v1462 = vunpack.c.h.b16 %v1291
  %v1463 = vunpack.c.l.b16 %v1292
  %v1464 = vunpack.c.l.b16 %v1293
  %v1465 = vunpack.c.h.b16 %v1293
  %v1466 = vunpack.c.l.b16 %v1294
  %v1467 = vunpack.c.l.b16 %v1295
  %v1468 = vunpack.c.h.b16 %v1295
  %v1469 = vunpack.c.l.b16 %v1296
  %v1470 = vunpack.c.l.b16 %v1297
  %v1471 = vunpack.c.h.b16 %v1297
  %v1472 = vunpack.c.l.b16 %v1298
  %v1473 = vunpack.c.l.b16 %v1299
  %v1474 = vunpack.c.h.b16 %v1299
  %v1475 = vunpack.c.l.b16 %v1300
  %v1476 = vunpack.c.l.b16 %v1301
  %v1477 = vunpack.c.h.b16 %v1301
  %v1478 = vunpack.c.l.b16 %v1302
  %v1479 = vunpack.c.l.b16 %v1303
  %v1480 = vunpack.c.h.b16 %v1303
  %v1481 = vunpack.c.l.b16 %v1304
  %v1482 = vunpack.c.l.b16 %v1305
  %v1483 = vunpack.c.h.b16 %v1305
  %v1484 = vunpack.c.l.b16 %v1306
  %v1485 = vunpack.c.l.b16 %v1307
  %v1486 = vunpack.c.h.b16 %v1307
  %v1487 = vunpack.c.l.b16 %v1308
  %v1488 = vunpack.c.l.b16 %v1309
  %v1489 = vunpack.c.h.b16 %v1309
  %v1490 = vunpack.c.l.b16 %v1310
  %v1491 = vunpack.c.l.b16 %v1311
  %v1492 = vunpack.c.h.b16 %v1311
  %v1493 = vunpack.c.l.b16 %v1312
  %v1494 = vunpack.c.l.b16 %v1313
  %v1495 = vunpack.c.h.b16 %v1313
  %v1496 = vunpack.c.l.b16 %v1314
  %v1497 = vunpack.c.l.b16 %v1315
  %v1498 = vunpack.c.h.b16 %v1315
  %v1499 = vunpack.c.l.b16 %v1316
  %v1500 = vunpack.c.l.b16 %v1317
  %v1501 = vunpack.c.h.b16 %v1317
  %v1502 = vunpack.c.l.b16 %v1318
  %v1503 = vunpack.c.l.b16 %v1319
  %v1504 = vunpack.c.h.b16 %v1319
  %v1505 = vunpack.c.l.b16 %v1320
  %v1506 = vunpack.c.l.b16 %v1321
  %v1507 = vunpack.c.h.b16 %v1321
  %v1508 = vunpack.c.l.b16 %v1322
  %v1509 = vunpack.c.l.b16 %v1323
  %v1510 = vunpack.c.h.b16 %v1323
  %v1511 = vunpack.c.l.b16 %v1324
  %v1512 = vunpack.c.l.b16 %v1325
  %v1513 = vunpack.c.h.b16 %v1325
  %v1514 = vunpack.c.l.b16 %v1326
  %v1515 = vunpack.c.l.b16 %v1327
  %v1516 = vunpack.c.h.b16 %v1327
  %v1517 = vunpack.c.l.b16 %v1328
  %v1518 = vunpack.c.l.b16 %v1329
  %v1519 = vunpack.c.h.b16 %v1329
  %v1520 = vunpack.c.l.b16 %v1330
  %v1521 = vunpack.c.l.b16 %v1331
  %v1522 = vunpack.c.h.b16 %v1331
  %v1523 = vunpack.c.l.b16 %v1332
  %v1524 = vunpack.c.l.b16 %v1333
  %v1525 = vunpack.c.h.b16 %v1333
  %v1526 = vunpack.c.l.b16 %v1334
  %v1527 = vunpack.c.l.b16 %v1335
  %v1528 = vunpack.c.h.b16 %v1335
  %v1529 = vunpack.c.l.b16 %v1336
  %v1530 = vunpack.c.l.b16 %v1337
  %v1531 = vunpack.c.h.b16 %v1337
  %v1532 = vunpack.c.l.b16 %v1338
  %v1533 = vunpack.c.l.b16 %v1339
  %v1534 = vunpack.c.h.b16 %v1339
  %v1535 = vunpack.c.l.b16 %v1340
  %v1536 = vunpack.c.l.b16 %v1341
  %v1537 = vunpack.c.h.b16 %v1341
  %v1538 = vunpack.c.l.b16 %v1342
  %v1539 = vunpack.c.l.b16 %v1343
  %v1540 = vunpack.c.h.b16 %v1343
  %v1541 = vunpack.c.l.b16 %v1344
  %v1542 = vunpack.c.l.b16 %v1345
  %v1543 = vunpack.c.h.b16 %v1345
  %v1544 = vunpack.c.l.b16 %v1346
  %v1545 = vunpack.c.l.b16 %v1347
  %v1546 = vunpack.c.h.b16 %v1347
  %v1547 = vunpack.c.l.b16 %v1348
  %v1548 = vunpack.c.l.b16 %v1349
  %v1549 = vunpack.c.h.b16 %v1349
  %v1550 = vunpack.c.l.b16 %v1350
  %v1551 = vunpack.c.l.b16 %v1351
  %v1552 = vunpack.c.h.b16 %v1351
  %v1553 = vunpack.c.l.b16 %v1352
  %v1554 = vunpack.c.l.b16 %v1353
  %v1555 = vunpack.c.h.b16 %v1353
  %v1556 = vunpack.c.l.b16 %v1354
  %v1557 = vunpack.c.l.b16 %v1355
  %v1558 = vunpack.c.h.b16 %v1355
  %v1559 = vunpack.c.l.b16 %v1356
  %v1560 = vunpack.c.l.b16 %v1357
  %v1561 = vunpack.c.h.b16 %v1357
  %v1562 = vunpack.c.l.b16 %v1358
  %v1563 = vunpack.c.l.b16 %v1359
  %v1564 = vunpack.c.h.b16 %v1359
  %v1565 = vunpack.c.l.b16 %v1360
  %v1566 = vunpack.c.l.b16 %v1361
  %v1567 = vunpack.c.h.b16 %v1361
  %v1568 = vunpack.c.l.b16 %v1362
  %v1569 = vpack.c.b16 %v1458, %v1455
  %v1570 = vpack.c.b16 %v1459, %v1456
  %v1571 = vpack.c.b16 %v1460, %v1457
  %v1572 = vpack.c.b16 %v1464, %v1461
  %v1573 = vpack.c.b16 %v1465, %v1462
  %v1574 = vpack.c.b16 %v1466, %v1463
  %v1575 = vpack.c.b16 %v1470, %v1467
  %v1576 = vpack.c.b16 %v1471, %v1468
  %v1577 = vpack.c.b16 %v1472, %v1469
  %v1578 = vpack.c.b16 %v1476, %v1473
  %v1579 = vpack.c.b16 %v1477, %v1474
  %v1580 = vpack.c.b16 %v1478, %v1475
  %v1581 = vpack.c.b16 %v1482, %v1479
  %v1582 = vpack.c.b16 %v1483, %v1480
  %v1583 = vpack.c.b16 %v1484, %v1481
  %v1584 = vpack.c.b16 %v1488, %v1485
  %v1585 = vpack.c.b16 %v1489, %v1486
  %v1586 = vpack.c.b16 %v1490, %v1487
  %v1587 = vpack.c.b16 %v1494, %v1491
  %v1588 = vpack.c.b16 %v1495, %v1492
  %v1589 = vpack.c.b16 %v1496, %v1493
  %v1590 = vpack.c.b16 %v1500, %v1497
  %v1591 = vpack.c.b16 %v1501, %v1498
  %v1592 = vpack.c.b16 %v1502, %v1499
  %v1593 = vpack.c.b16 %v1506, %v1503
  %v1594 = vpack.c.b16 %v1507, %v1504
  %v1595 = vpack.c.b16 %v1508, %v1505
  %v1596 = vpack.c.b16 %v1512, %v1509
  %v1597 = vpack.c.b16 %v1513, %v1510
  %v1598 = vpack.c.b16 %v1514, %v1511
  %v1599 = vpack.c.b16 %v1518, %v1515
  %v1600 = vpack.c.b16 %v1519, %v1516
  %v1601 = vpack.c.b16 %v1520, %v1517
  %v1602 = vpack.c.b16 %v1524, %v1521
  %v1603 = vpack.c.b16 %v1525, %v1522
  %v1604 = vpack.c.b16 %v1526, %v1523
  %v1605 = vpack.c.b16 %v1530, %v1527
  %v1606 = vpack.c.b16 %v1531, %v1528
  %v1607 = vpack.c.b16 %v1532, %v1529
  %v1608 = vpack.c.b16 %v1536, %v1533
  %v1609 = vpack.c.b16 %v1537, %v1534
  %v1610 = vpack.c.b16 %v1538, %v1535
  %v1611 = vpack.c.b16 %v1542, %v1539
  %v1612 = vpack.c.b16 %v1543, %v1540
  %v1613 = vpack.c.b16 %v1544, %v1541
  %v1614 = vpack.c.b16 %v1548, %v1545
  %v1615 = vpack.c.b16 %v1549, %v1546
  %v1616 = vpack.c.b16 %v1550, %v1547
  %v1617 = vpack.c.b16 %v1554, %v1551
  %v1618 = vpack.c.b16 %v1555, %v1552
  %v1619 = vpack.c.b16 %v1556, %v1553
  %v1620 = vpack.c.b16 %v1560, %v1557
  %v1621 = vpack.c.b16 %v1561, %v1558
  %v1622 = vpack.c.b16 %v1562, %v1559
  %v1623 = vpack.c.b16 %v1566, %v1563
  %v1624 = vpack.c.b16 %v1567, %v1564
  %v1625 = vpack.c.b16 %v1568, %v1565
  %v1681 = vsel %vm427, %v1376, 0
  %v1684 = vsel %vm431, %v1623, 0
  %v1687 = vsel %vm431, %v1624, 0
  %v1690 = vsel %vm431, %v1625, 0
  %1692 = vmatprep.subr.bf16.mxu0 %v1591
  %1693 = vmatpush1.bf16.msra.mxu0 %v1590
  %1694 = vmatprep.subr.bf16.mxu0 %v1588
  %1695 = vmatpush1.bf16.msra.mxu0 %v1587
  %1696 = vmatprep.subr.bf16.mxu0 %v1585
  %1697 = vmatpush1.bf16.msra.mxu0 %v1584
  %1698 = vmatprep.subr.bf16.mxu0 %v1582
  %1699 = vmatpush1.bf16.msra.mxu0 %v1581
  %1700 = vmatprep.subr.bf16.mxu0 %v1579
  %1701 = vmatpush1.bf16.msra.mxu0 %v1578
  %1702 = vmatprep.subr.bf16.mxu0 %v1576
  %1703 = vmatpush1.bf16.msra.mxu0 %v1575
  %1704 = vmatprep.subr.bf16.mxu0 %v1573
  %1705 = vmatpush1.bf16.msra.mxu0 %v1572
  %1706 = vmatprep.subr.bf16.mxu0 %v1570
  %1707 = vmatpush1.bf16.msra.mxu0 %v1569
  %1708 = vmatprep.subr.bf16.mxu0 %v1615
  %1709 = vmatpush2.bf16.msra.mxu0 %v1614
  %1710 = vmatprep.subr.bf16.mxu0 %v1612
  %1711 = vmatpush2.bf16.msra.mxu0 %v1611
  %1712 = vmatprep.subr.bf16.mxu0 %v1609
  %1713 = vmatpush2.bf16.msra.mxu0 %v1608
  %1714 = vmatprep.subr.bf16.mxu0 %v1606
  %1715 = vmatpush2.bf16.msra.mxu0 %v1605
  %1716 = vmatprep.subr.bf16.mxu0 %v1603
  %1717 = vmatpush2.bf16.msra.mxu0 %v1602
  %1718 = vmatprep.subr.bf16.mxu0 %v1600
  %1719 = vmatpush2.bf16.msra.mxu0 %v1599
  %1720 = vmatprep.subr.bf16.mxu0 %v1597
  %1721 = vmatpush2.bf16.msra.mxu0 %v1596
  %1722 = vmatprep.subr.bf16.mxu0 %v1594
  %1723 = vmatpush2.bf16.msra.mxu0 %v1593
  %1724 = vmatprep.mubr.bf16.mxu0 %v1375
  %1725 = vmatmul.mubr.bf16.gmra.mxu0 %v1374
  %v1726 = vpop.f32.mrf.mxu0
  %v1727 = vadd.f32 0.0, %v1726
  %v1728 = vpop.f32.mrf.mxu0
  %v1729 = vadd.f32 0.0, %v1728
  %v1730 = vpop.f32.mrf.mxu0
  %v1731 = vadd.f32 0.0, %v1730
  %v1732 = vpop.f32.mrf.mxu0
  %v1733 = vadd.f32 0.0, %v1732
  %1734 = vdwg.mxu0
  %1735 = vmatprep.subr.bf16.mxu0 0
  %1736 = vmatpush1.bf16.msra.mxu0 0
  %1737 = vmatprep.subr.bf16.mxu0 0
  %1738 = vmatpush1.bf16.msra.mxu0 0
  %1739 = vmatprep.subr.bf16.mxu0 0
  %1740 = vmatpush1.bf16.msra.mxu0 0
  %1741 = vmatprep.subr.bf16.mxu0 0
  %1742 = vmatpush1.bf16.msra.mxu0 0
  %1743 = vmatprep.subr.bf16.mxu0 0
  %1744 = vmatpush1.bf16.msra.mxu0 0
  %1745 = vmatprep.subr.bf16.mxu0 %v1687
  %1746 = vmatpush1.bf16.msra.mxu0 %v1684
  %1747 = vmatprep.subr.bf16.mxu0 %v1621
  %1748 = vmatpush1.bf16.msra.mxu0 %v1620
  %1749 = vmatprep.subr.bf16.mxu0 %v1618
  %1750 = vmatpush1.bf16.msra.mxu0 %v1617
  %1751 = vmatprep.subr.bf16.mxu0 0
  %1752 = vmatpush2.bf16.msra.mxu0 0
  %1753 = vmatprep.subr.bf16.mxu0 0
  %1754 = vmatpush2.bf16.msra.mxu0 0
  %1755 = vmatprep.subr.bf16.mxu0 0
  %1756 = vmatpush2.bf16.msra.mxu0 0
  %1757 = vmatprep.subr.bf16.mxu0 0
  %1758 = vmatpush2.bf16.msra.mxu0 0
  %1759 = vmatprep.subr.bf16.mxu0 0
  %1760 = vmatpush2.bf16.msra.mxu0 0
  %1761 = vmatprep.subr.bf16.mxu0 0
  %1762 = vmatpush2.bf16.msra.mxu0 0
  %1763 = vmatprep.subr.bf16.mxu0 0
  %1764 = vmatpush2.bf16.msra.mxu0 0
  %1765 = vmatprep.subr.bf16.mxu0 0
  %1766 = vmatpush2.bf16.msra.mxu0 0
  %1767 = vmatprep.mubr.bf16.mxu0 0
  %1768 = vmatmul.mubr.bf16.gmra.mxu0 %v1681
  %v1769 = vpop.f32.mrf.mxu0
  %v1770 = vadd.f32 %v1727, %v1769
  %v1771 = vpop.f32.mrf.mxu0
  %v1772 = vadd.f32 %v1729, %v1771
  %v1773 = vpop.f32.mrf.mxu0
  %v1774 = vadd.f32 %v1731, %v1773
  %v1775 = vpop.f32.mrf.mxu0
  %v1776 = vadd.f32 %v1733, %v1775
  %1777 = vdwg.mxu0
  %1778 = vmatprep.subr.bf16.mxu0 0
  %1779 = vmatpush1.bf16.msra.mxu0 %v1592
  %1780 = vmatprep.subr.bf16.mxu0 0
  %1781 = vmatpush1.bf16.msra.mxu0 %v1589
  %1782 = vmatprep.subr.bf16.mxu0 0
  %1783 = vmatpush1.bf16.msra.mxu0 %v1586
  %1784 = vmatprep.subr.bf16.mxu0 0
  %1785 = vmatpush1.bf16.msra.mxu0 %v1583
  %1786 = vmatprep.subr.bf16.mxu0 0
  %1787 = vmatpush1.bf16.msra.mxu0 %v1580
  %1788 = vmatprep.subr.bf16.mxu0 0
  %1789 = vmatpush1.bf16.msra.mxu0 %v1577
  %1790 = vmatprep.subr.bf16.mxu0 0
  %1791 = vmatpush1.bf16.msra.mxu0 %v1574
  %1792 = vmatprep.subr.bf16.mxu0 0
  %1793 = vmatpush1.bf16.msra.mxu0 %v1571
  %1794 = vmatprep.subr.bf16.mxu0 0
  %1795 = vmatpush2.bf16.msra.mxu0 %v1616
  %1796 = vmatprep.subr.bf16.mxu0 0
  %1797 = vmatpush2.bf16.msra.mxu0 %v1613
  %1798 = vmatprep.subr.bf16.mxu0 0
  %1799 = vmatpush2.bf16.msra.mxu0 %v1610
  %1800 = vmatprep.subr.bf16.mxu0 0
  %1801 = vmatpush2.bf16.msra.mxu0 %v1607
  %1802 = vmatprep.subr.bf16.mxu0 0
  %1803 = vmatpush2.bf16.msra.mxu0 %v1604
  %1804 = vmatprep.subr.bf16.mxu0 0
  %1805 = vmatpush2.bf16.msra.mxu0 %v1601
  %1806 = vmatprep.subr.bf16.mxu0 0
  %1807 = vmatpush2.bf16.msra.mxu0 %v1598
  %1808 = vmatprep.subr.bf16.mxu0 0
  %1809 = vmatpush2.bf16.msra.mxu0 %v1595
  %1810 = vmatprep.mubr.bf16.mxu0 %v1375
  %1811 = vmatmul.mubr.bf16.gmra.mxu0 %v1374
  %v1812 = vpop.f32.mrf.mxu0
  %v1813 = vadd.f32 0.0, %v1812
  %v1814 = vpop.f32.mrf.mxu0
  %v1815 = vpop.f32.mrf.mxu0
  %v1816 = vadd.f32 0.0, %v1815
  %v1817 = vpop.f32.mrf.mxu0
  %1818 = vdwg.mxu0
  %1819 = vmatprep.subr.bf16.mxu0 0
  %1820 = vmatpush1.bf16.msra.mxu0 0
  %1821 = vmatprep.subr.bf16.mxu0 0
  %1822 = vmatpush1.bf16.msra.mxu0 0
  %1823 = vmatprep.subr.bf16.mxu0 0
  %1824 = vmatpush1.bf16.msra.mxu0 0
  %1825 = vmatprep.subr.bf16.mxu0 0
  %1826 = vmatpush1.bf16.msra.mxu0 0
  %1827 = vmatprep.subr.bf16.mxu0 0
  %1828 = vmatpush1.bf16.msra.mxu0 0
  %1829 = vmatprep.subr.bf16.mxu0 0
  %1830 = vmatpush1.bf16.msra.mxu0 %v1690
  %1831 = vmatprep.subr.bf16.mxu0 0
  %1832 = vmatpush1.bf16.msra.mxu0 %v1622
  %1833 = vmatprep.subr.bf16.mxu0 0
  %1834 = vmatpush1.bf16.msra.mxu0 %v1619
  %1835 = vmatprep.subr.bf16.mxu0 0
  %1836 = vmatpush2.bf16.msra.mxu0 0
  %1837 = vmatprep.subr.bf16.mxu0 0
  %1838 = vmatpush2.bf16.msra.mxu0 0
  %1839 = vmatprep.subr.bf16.mxu0 0
  %1840 = vmatpush2.bf16.msra.mxu0 0
  %1841 = vmatprep.subr.bf16.mxu0 0
  %1842 = vmatpush2.bf16.msra.mxu0 0
  %1843 = vmatprep.subr.bf16.mxu0 0
  %1844 = vmatpush2.bf16.msra.mxu0 0
  %1845 = vmatprep.subr.bf16.mxu0 0
  %1846 = vmatpush2.bf16.msra.mxu0 0
  %1847 = vmatprep.subr.bf16.mxu0 0
  %1848 = vmatpush2.bf16.msra.mxu0 0
  %1849 = vmatprep.subr.bf16.mxu0 0
  %1850 = vmatpush2.bf16.msra.mxu0 0
  %1851 = vmatprep.mubr.bf16.mxu0 0
  %1852 = vmatmul.mubr.bf16.gmra.mxu0 %v1681
  %v1853 = vpop.f32.mrf.mxu0
  %v1854 = vadd.f32 %v1813, %v1853
  %v1855 = vpop.f32.mrf.mxu0
  %v1856 = vpop.f32.mrf.mxu0
  %v1857 = vadd.f32 %v1816, %v1856
  %v1858 = vpop.f32.mrf.mxu0
  %1859 = vdwg.mxu0
  %v1862 = vrot.slane %v1770, 7
  %v1863 = vrot.slane %v1774, 7
  %v1866 = vsel %vm615, 0.0, %v1862
  %v1867 = vsel %vm615, 0.0, %v1863
  %v1870 = vrot.slane %v1854, 1
  %v1871 = vrot.slane %v1857, 1
  %v1874 = vsel %vm624, %v1870, 0.0
  %v1875 = vsel %vm624, %v1871, 0.0
  %v1876 = vadd.f32 %v1866, %v1772
  %v1877 = vadd.f32 %v1867, %v1776
  %v1878 = vadd.f32 %v1876, %v1874
  %v1879 = vadd.f32 %v1877, %v1875
  %v1881 = vlaneseq
  %v1882 = vshrl.u32 %v1881, 7
  %v1883 = vsub.s32 0, %v1882
  %v1884 = vrot.slane %v1363, %v1883
  %v1886 = vadd.f32 %v1878, %v1884
  %v1887 = vadd.f32 %v1879, %v1884
  %v1888 = vmax.f32 %v1886, 0.0
  %v1889 = vmax.f32 %v1887, 0.0
  %v1890 = vrot.slane %v1888, 4
  %v1891 = vmax.f32 %v1888, %v1890
  %v1892 = vrot.slane %v1891, 2
  %v1893 = vmax.f32 %v1891, %v1892
  %v1894 = vrot.slane %v1893, 1
  %v1895 = vmax.f32 %v1893, %v1894
  %v1896 = vrot.slane %v1889, 4
  %v1897 = vmax.f32 %v1889, %v1896
  %v1898 = vrot.slane %v1897, 2
  %v1899 = vmax.f32 %v1897, %v1898
  %v1900 = vrot.slane %v1899, 1
  %v1901 = vmax.f32 %v1899, %v1900
  %v1904 = vsel %vm655, %v1901, %v1895
  %1906 = vst [vmem:[%s9] sm:$0x3] %v1904
  // Predicated region
  $region30: #{cnn_forward_train.1} parent=0 // pred_check
    _
  $region31: #{cnn_forward_train.1} parent=0 // pred_check_branch
    %1908 = sbr.rel (0) target = $region33
  $region32: #{cnn_forward_train.1} parent=0 // pred_region
    _
  $region33: #{cnn_forward_train.1} parent=0 // pred_fallthru
    _
  // Predicated region
  $region34: #{cnn_forward_train.1} parent=0 // pred_check
    _
  $region35: #{cnn_forward_train.1} parent=0 // pred_check_branch
    %1910 = sbr.rel (0) target = $region37
  $region36: #{cnn_forward_train.1} parent=0 // pred_region
    _
  $region37: #{cnn_forward_train.1} parent=0 // pred_fallthru
    _
  // Predicated region
  $region38: #{cnn_forward_train.1} parent=0 // pred_check
    _
  $region39: #{cnn_forward_train.1} parent=0 // pred_check_branch
    %1912 = sbr.rel (0) target = $region41
  $region40: #{cnn_forward_train.1} parent=0 // pred_region
    _
  $region41: #{cnn_forward_train.1} parent=0 // pred_fallthru
    _
  // Predicated region
  $region42: #{cnn_forward_train.1} parent=0 // pred_check
    _
  $region43: #{cnn_forward_train.1} parent=0 // pred_check_branch
    %1914 = sbr.rel (0) target = $region45
  $region44: #{cnn_forward_train.1} parent=0 // pred_region
    _
  $region45: #{cnn_forward_train.1} parent=0 // pred_fallthru
    _
  // Predicated region
  $region46: #{cnn_forward_train.1} parent=0 // pred_check
    _
  $region47: #{cnn_forward_train.1} parent=0 // pred_check_branch
    %1916 = sbr.rel (0) target = $region49
  $region48: #{cnn_forward_train.1} parent=0 // pred_region
    _
  $region49: #{cnn_forward_train.1} parent=0 // pred_fallthru
    _
  // Predicated region
  $region50: #{cnn_forward_train.1} parent=0 // pred_check
    _
  $region51: #{cnn_forward_train.1} parent=0 // pred_check_branch
    %1918 = sbr.rel (0) target = $region53
  $region52: #{cnn_forward_train.1} parent=0 // pred_region
    _
  $region53: #{cnn_forward_train.1} parent=0 // pred_fallthru
    _

</llo_original>
